<compile_context>
chip_gen: v5e
topology: v5e:2x2
jax: 0.10.0
libtpu: 0.0.40
codegen_flags: <defaults>
</compile_context>

<pallas_src>
import numpy as np
import jax
import jax.numpy as jnp
from jax.experimental import pallas as pl
from jax.experimental.pallas import tpu as pltpu


# ----------------------------------------------------------------------------- weights
def _gaussian_blur_taps_1d(kernel_size: int) -> np.ndarray:
    """1D factor v of GaussianBlurLayer's kernel (the 2D kernel is exactly outer(v, v)).

    Replicates scipy.ndimage.gaussian_filter applied to a length-k delta
    (truncate=4.0, scipy 'reflect' boundary == np.pad 'symmetric')."""
    sigma = 0.3 * ((kernel_size - 1) * 0.5 - 1) + 0.8
    radius = int(4.0 * sigma + 0.5)
    x = np.arange(-radius, radius + 1, dtype=np.float64)
    g1d = np.exp(-0.5 * (x / sigma) ** 2)
    g1d = g1d / g1d.sum()
    e = np.zeros((kernel_size,), dtype=np.float64)
    e[kernel_size // 2] = 1.0
    ep = np.pad(e, (radius, radius), mode="symmetric")
    L = 2 * radius + 1
    return np.array([np.dot(ep[i:i + L], g1d) for i in range(kernel_size)])


def _gaussian_blur_weights_2d(kernel_size: int) -> np.ndarray:
    """Full 2D kernel, exactly as GaussianBlurLayer._init_kernel builds it (for the
    reference check in __main__)."""
    sigma = 0.3 * ((kernel_size - 1) * 0.5 - 1) + 0.8
    radius = int(4.0 * sigma + 0.5)
    x = np.arange(-radius, radius + 1, dtype=np.float64)
    g1d = np.exp(-0.5 * (x / sigma) ** 2)
    g1d = g1d / g1d.sum()

    n = np.zeros((kernel_size, kernel_size), dtype=np.float64)
    c = kernel_size // 2
    n[c, c] = 1.0

    def corr1d(a, axis):
        pad = [(0, 0)] * a.ndim
        pad[axis] = (radius, radius)
        ap = np.pad(a, pad, mode="symmetric")
        out = np.zeros_like(a)
        L = 2 * radius + 1
        for idx in range(a.shape[axis]):
            sl = [slice(None)] * a.ndim
            sl[axis] = slice(idx, idx + L)
            osl = [slice(None)] * a.ndim
            osl[axis] = idx
            out[tuple(osl)] = np.tensordot(ap[tuple(sl)], g1d, axes=([axis], [0]))
        return out

    return corr1d(corr1d(n, 0), 1)


def _banded_reflect_blur_matrix(n: int, taps: np.ndarray) -> np.ndarray:
    """(n, n) banded matrix B with B[i, s] = sum of 1D taps whose ReflectionPad2d-padded
    source index for output position i is s.  The reflect halo is folded into the band,
    so  blur = B_h @ x @ B_w^T  needs no padded operand at all."""
    K = len(taps)
    p = K // 2
    B = np.zeros((n, n), dtype=np.float64)
    for i in range(n):
        for t in range(K):
            r = i + t - p                       # unpadded source index (may be OOB)
            if r < 0:
                s = -r                          # left/top reflection
            elif r >= n:
                s = 2 * (n - 1) - r             # right/bottom reflection
            else:
                s = r
            B[i, s] += taps[t]
    return B


# ------------------------------------------------------------------------------ kernel
def _make_flawmap_kernel(nb: int, clip_threshold: float):
    thr = float(clip_threshold)

    def kernel(x_ref, bh_ref, bwt_ref, o_ref):
        # x_ref:   (nb, H, W) raw flawmap samples (one HBM read, lane-dense)
        # bh_ref:  (H, H)     banded vertical-blur matrix (taps + reflect halo folded in)
        # bwt_ref: (W, W)     transposed banded horizontal-blur matrix
        # o_ref:   (nb, H, W) post-processed flawmap (one lane-dense HBM write)
        bh = bh_ref[...]
        bwt = bwt_ref[...]
        for n in range(nb):                       # static unroll (nb kept small)
            # step 1: ReLU, applied exactly once per element.
            x = jnp.maximum(x_ref[n], 0.0)
            # step 2: separable gaussian blur with ReflectionPad2d halo, both 1D passes
            # on the MXU (f32-accurate contraction); no unaligned lane slices, no scratch.
            h = jnp.dot(x, bwt, preferred_element_type=jnp.float32,
                        precision=jax.lax.Precision.HIGHEST)          # horizontal pass
            y = jnp.dot(bh, h, preferred_element_type=jnp.float32,
                        precision=jax.lax.Precision.HIGHEST)          # vertical pass
            # step 3: per-sample max/min — reduce over H first (VPU elementwise across
            # row vregs), then one cross-lane reduce.
            fmax = jnp.max(jnp.max(y, axis=0, keepdims=True), axis=1, keepdims=True)
            fmin = jnp.min(jnp.min(y, axis=0, keepdims=True), axis=1, keepdims=True)
            # steps 4-5: clip-threshold mask, then min-max normalization.
            y = y * (fmax > thr).astype(jnp.float32)
            inv = 1.0 / (fmax - fmin + 1e-9)
            y = (y - fmin) * inv
            o_ref[n] = y.astype(o_ref.dtype)

    return kernel


# ----------------------------------------------------------------------------- wrapper
def _pick_samples_per_block(N: int, H: int, W: int,
                            budget_bytes: int = 12 * 2**20, max_unroll: int = 8) -> int:
    """Block Nb samples per grid step to amortize the ~0.35us/step pipeline overhead,
    while keeping >= 2 grid steps (both v7x TCs) and staying inside the VMEM budget."""
    sample_bytes = H * W * 4
    nb = int(max(1, min(budget_bytes // sample_bytes, max_unroll, max(1, N // 2))))
    while N % nb:
        nb -= 1
    return max(1, nb)


def flawmap_handler(flawmap: jax.Array, kernel_size: int,
                    clip_threshold: float = 0.1) -> jax.Array:
    """Fused FlawmapHandler.forward. flawmap: (N, 1, H, W) float32."""
    assert flawmap.ndim == 4
    N, C, H, W = flawmap.shape
    assert C == 1, "FlawmapHandler blurs a single-channel flawmap"
    K = kernel_size
    assert K % 2 == 1
    p = K // 2
    # ReflectionPad2d requires pad < spatial extent.
    assert p < H and p < W

    taps = _gaussian_blur_taps_1d(K)
    bh = jnp.asarray(_banded_reflect_blur_matrix(H, taps), dtype=jnp.float32)
    bwt = jnp.asarray(_banded_reflect_blur_matrix(W, taps).T, dtype=jnp.float32)

    x = flawmap.reshape(N, H, W)

    nb = _pick_samples_per_block(N, H, W)
    grid = (N // nb,)

    # Explicit VMEM budget (valid on v7x: 64 MiB physical / 32 MiB scoped default).
    block_bytes = nb * H * W * 4
    weight_bytes = (H * H + W * W) * 4
    vmem_needed = 2 * 2 * block_bytes + 2 * weight_bytes   # double-buffered in+out + weights
    vmem_limit = int(min(100 * 2**20, max(32 * 2**20, 2 * vmem_needed)))

    kernel = _make_flawmap_kernel(nb, clip_threshold)

    out = pl.pallas_call(
        kernel,
        out_shape=jax.ShapeDtypeStruct((N, H, W), flawmap.dtype),
        grid_spec=pltpu.PrefetchScalarGridSpec(
            num_scalar_prefetch=0,
            grid=grid,
            in_specs=[
                pl.BlockSpec((nb, H, W), lambda i: (i, 0, 0)),   # raw flawmap block
                pl.BlockSpec((H, H), lambda i: (0, 0)),          # B_h   (resident)
                pl.BlockSpec((W, W), lambda i: (0, 0)),          # B_w^T (resident)
            ],
            out_specs=pl.BlockSpec((nb, H, W), lambda i: (i, 0, 0)),
        ),
        compiler_params=pltpu.CompilerParams(
            dimension_semantics=("parallel",),
            vmem_limit_bytes=vmem_limit,
        ),
    )(x, bh, bwt)
    return out.reshape(N, C, H, W)


# -------------------------------------------------------------------------------- main
if __name__ == "__main__":
    # FlawmapHandler: blur_ksize = image_height // 16 (+1 if even); flawmap has C == 1.
    N, C, H, W = 2, 1, 128, 128
    blur_ksize = H // 16
    blur_ksize = blur_ksize + 1 if blur_ksize % 2 == 0 else blur_ksize   # -> 9

    key = jax.random.PRNGKey(0)
    x = jax.random.normal(key, (N, C, H, W), dtype=jnp.float32)
    # Scale the second sample down so its blurred max falls below the 0.1 clip threshold
    # (exercises the `max_matrix > clip_threshold` masking branch).
    x = x.at[1].multiply(0.01)

    y = jax.block_until_ready(flawmap_handler(x, blur_ksize))

    # ---- plain-JAX reference with the original (non-separated) 2D kernel ----
    w2d = _gaussian_blur_weights_2d(blur_ksize)
    v1d = _gaussian_blur_taps_1d(blur_ksize)
    np.testing.assert_allclose(np.outer(v1d, v1d), w2d, rtol=1e-10, atol=1e-12)

    p = blur_ksize // 2
    xr = x * (x >= 0).astype(x.dtype)
    xpad = jnp.pad(xr, ((0, 0), (0, 0), (p, p), (p, p)), mode="reflect")
    blur = jnp.zeros_like(x)
    for ki in range(blur_ksize):
        for kj in range(blur_ksize):
            blur = blur + float(w2d[ki, kj]) * xpad[:, :, ki:ki + H, kj:kj + W]
    fmax = jnp.max(blur, axis=(1, 2, 3), keepdims=True)
    fmin = jnp.min(blur, axis=(1, 2, 3), keepdims=True)
    ref = blur * (fmax > 0.1).astype(blur.dtype)
    ref = (ref - fmin) / (fmax - fmin + 1e-9)
    ref = jax.block_until_ready(ref)

    assert y.shape == x.shape
    np.testing.assert_allclose(np.asarray(y), np.asarray(ref), rtol=1e-5, atol=1e-5)
    print("KERNEL_OK")
</pallas_src>

<mosaic_0001>
module attributes {stable_mosaic.version = 11 : i64} {
  func.func @kernel(%arg0: i32, %arg1: memref<1x128x128xf32, #tpu.memory_space<vmem>>, %arg2: memref<128x128xf32, #tpu.memory_space<vmem>>, %arg3: memref<128x128xf32, #tpu.memory_space<vmem>>, %arg4: memref<1x128x128xf32, #tpu.memory_space<vmem>>) attributes {dimension_semantics = [#tpu.dimension_semantics<parallel>], iteration_bounds = array<i64: 2>, scalar_prefetch = 0 : i64, scratch_operands = 0 : i64, tpu.core_type = #tpu.core_type<tc>, window_params = [{transform_indices = @transform_0, window_bounds = array<i64: 1, 128, 128>}, {pipeline_mode = #tpu.pipeline_mode<synchronous>, transform_indices = @transform_1, window_bounds = array<i64: 128, 128>}, {pipeline_mode = #tpu.pipeline_mode<synchronous>, transform_indices = @transform_2, window_bounds = array<i64: 128, 128>}, {transform_indices = @transform_3, window_bounds = array<i64: 1, 128, 128>}]} {
    %c0 = arith.constant 0 : index
    %c0_0 = arith.constant 0 : index
    %0 = vector.load %arg2[%c0, %c0_0] : memref<128x128xf32, #tpu.memory_space<vmem>>, vector<128x128xf32>
    %c0_1 = arith.constant 0 : index
    %c0_2 = arith.constant 0 : index
    %1 = vector.load %arg3[%c0_1, %c0_2] : memref<128x128xf32, #tpu.memory_space<vmem>>, vector<128x128xf32>
    %c0_3 = arith.constant 0 : index
    %c0_4 = arith.constant 0 : index
    %c0_5 = arith.constant 0 : index
    %2 = vector.load %arg1[%c0_3, %c0_4, %c0_5] : memref<1x128x128xf32, #tpu.memory_space<vmem>>, vector<1x128x128xf32>
    %3 = vector.shape_cast %2 : vector<1x128x128xf32> to vector<128x128xf32>
    %cst = arith.constant 0.000000e+00 : f32
    %4 = vector.broadcast %cst : f32 to vector<128x128xf32>
    %5 = arith.maximumf %3, %4 : vector<128x128xf32>
    %cst_6 = arith.constant dense<0.000000e+00> : vector<128x128xf32>
    %6 = tpu.matmul %5, %1, %cst_6 {dimension_numbers = #tpu.dot_dimension_numbers<[1], [0], [0], [1], [0, 0, 1, 1], [], []>, precision = #tpu.contract_precision<fp32>} : vector<128x128xf32>, vector<128x128xf32>, vector<128x128xf32> -> vector<128x128xf32>
    %cst_7 = arith.constant dense<0.000000e+00> : vector<128x128xf32>
    %7 = tpu.matmul %0, %6, %cst_7 {dimension_numbers = #tpu.dot_dimension_numbers<[1], [0], [0], [1], [0, 0, 1, 1], [], []>, precision = #tpu.contract_precision<fp32>} : vector<128x128xf32>, vector<128x128xf32>, vector<128x128xf32> -> vector<128x128xf32>
    %cst_8 = arith.constant dense<0xFF800000> : vector<128xf32>
    %8 = vector.multi_reduction <maximumf>, %7, %cst_8 [0] : vector<128x128xf32> to vector<128xf32>
    %9 = vector.shape_cast %8 : vector<128xf32> to vector<1x128xf32>
    %cst_9 = arith.constant dense<0xFF800000> : vector<1xf32>
    %10 = vector.multi_reduction <maximumf>, %9, %cst_9 [1] : vector<1x128xf32> to vector<1xf32>
    %11 = vector.shape_cast %10 : vector<1xf32> to vector<1x1xf32>
    %cst_10 = arith.constant dense<0x7F800000> : vector<128xf32>
    %12 = vector.multi_reduction <minimumf>, %7, %cst_10 [0] : vector<128x128xf32> to vector<128xf32>
    %13 = vector.shape_cast %12 : vector<128xf32> to vector<1x128xf32>
    %cst_11 = arith.constant dense<0x7F800000> : vector<1xf32>
    %14 = vector.multi_reduction <minimumf>, %13, %cst_11 [1] : vector<1x128xf32> to vector<1xf32>
    %15 = vector.shape_cast %14 : vector<1xf32> to vector<1x1xf32>
    %cst_12 = arith.constant 1.000000e-01 : f32
    %16 = vector.broadcast %cst_12 : f32 to vector<1x1xf32>
    %17 = arith.cmpf ogt, %11, %16 : vector<1x1xf32>
    %18 = arith.extui %17 : vector<1x1xi1> to vector<1x1xi32>
    %19 = arith.sitofp %18 : vector<1x1xi32> to vector<1x1xf32>
    %20 = vector.broadcast %19 : vector<1x1xf32> to vector<128x128xf32>
    %21 = arith.mulf %7, %20 : vector<128x128xf32>
    %22 = arith.subf %11, %15 : vector<1x1xf32>
    %cst_13 = arith.constant 9.99999971E-10 : f32
    %23 = vector.broadcast %cst_13 : f32 to vector<1x1xf32>
    %24 = arith.addf %22, %23 : vector<1x1xf32>
    %cst_14 = arith.constant 1.000000e+00 : f32
    %25 = vector.broadcast %cst_14 : f32 to vector<1x1xf32>
    %26 = arith.divf %25, %24 : vector<1x1xf32>
    %27 = vector.broadcast %15 : vector<1x1xf32> to vector<128x128xf32>
    %28 = arith.subf %21, %27 : vector<128x128xf32>
    %29 = vector.broadcast %26 : vector<1x1xf32> to vector<128x128xf32>
    %30 = arith.mulf %28, %29 : vector<128x128xf32>
    %c0_15 = arith.constant 0 : index
    %c0_16 = arith.constant 0 : index
    %c0_17 = arith.constant 0 : index
    %31 = vector.load %arg4[%c0_15, %c0_16, %c0_17] : memref<1x128x128xf32, #tpu.memory_space<vmem>>, vector<1x128x128xf32>
    %32 = vector.shape_cast %31 : vector<1x128x128xf32> to vector<128x128xf32>
    %33 = vector.shape_cast %30 : vector<128x128xf32> to vector<1x128x128xf32>
    tpu.vector_store %arg4[%c0_15, %c0_16, %c0_17], %33 {strides = array<i32>} : memref<1x128x128xf32, #tpu.memory_space<vmem>>, vector<1x128x128xf32>,
    return
  }
  func.func @transform_0(%arg0: i32) -> (i32, i32, i32) {
    %c0_i32 = arith.constant 0 : i32
    %c0_i32_0 = arith.constant 0 : i32
    %c0_i32_1 = arith.constant 0 : i32
    return %arg0, %c0_i32, %c0_i32_0 : i32, i32, i32
  }
  func.func @transform_1(%arg0: i32) -> (i32, i32) {
    %c0_i32 = arith.constant 0 : i32
    %c0_i32_0 = arith.constant 0 : i32
    %c0_i32_1 = arith.constant 0 : i32
    return %c0_i32, %c0_i32_0 : i32, i32
  }
  func.func @transform_2(%arg0: i32) -> (i32, i32) {
    %c0_i32 = arith.constant 0 : i32
    %c0_i32_0 = arith.constant 0 : i32
    %c0_i32_1 = arith.constant 0 : i32
    return %c0_i32, %c0_i32_0 : i32, i32
  }
  func.func @transform_3(%arg0: i32) -> (i32, i32, i32) {
    %c0_i32 = arith.constant 0 : i32
    %c0_i32_0 = arith.constant 0 : i32
    %c0_i32_1 = arith.constant 0 : i32
    return %arg0, %c0_i32, %c0_i32_0 : i32, i32, i32
  }
}

</mosaic_0001>

<llo_original>
// kernel: tpu_custom_call.1
$region0: #{tpu_custom_call.1}
  #allocation0 [shape = 'u32[]', space=smem, size = 0x4, offset = 0x4, fixed_abs, tag = 'smem constant byte address 0x4 - core index']
  #allocation1 [shape = 'u32[72,128]{1,0:T(1,128)}', space=vmem, size = 0x9000, scoped, tag = 'internal scratch']
  %s0 = inlined_call_operand.hbm [shape: f32[2,128,128], index: 0, kind: input, shape index: {}]
  %s1 = inlined_call_operand.hbm [shape: f32[128,128], index: 1, kind: input, shape index: {}]
  %s2 = inlined_call_operand.hbm [shape: f32[128,128], index: 2, kind: input, shape index: {}]
  %s3 = inlined_call_operand.hbm [shape: f32[2,128,128], index: 3, kind: output, shape index: {}]
  %s4 = sld [smem:[#allocation0]]
  $region57: #{tpu_custom_call.1} parent=0
    _
  %s6 = ssub.s32 1, %s4
  %s7 = scalar_select 0, %s6, %s4
  $region1: #{tpu_custom_call.1} parent=0
    #allocation2 [shape = 'u8[131072]{0}', space=vmem, size = 0x20000, scoped, tag = 'input window, operand 0']
    #allocation3 [shape = 's32[2]{0}', space=sflag, size = 0x8, scoped, tag = 'scoped memory for tpu_custom_call.1']
    #allocation4 [shape = 's32[2]{0}', space=sflag, size = 0x8, scoped, tag = 'scoped memory for tpu_custom_call.1']
    #allocation5 [shape = 'u8[65536]{0}', space=vmem, size = 0x10000, scoped, tag = 'input window, operand 1, single buffered']
    #allocation6 [shape = 's32[1]{0}', space=sflag, size = 0x4, scoped, tag = 'scoped memory for tpu_custom_call.1']
    #allocation7 [shape = 'u8[65536]{0}', space=vmem, size = 0x10000, scoped, tag = 'input window, operand 2, single buffered']
    #allocation8 [shape = 'u8[131072]{0}', space=vmem, size = 0x20000, scoped, tag = 'output window, operand 0']
    %8 = vsyncpa [#allocation3], 0
    %s9 = scalar_lea.sflag [#allocation3], 1
    %10 = vsyncpa %s9, 0
    %11 = vsyncpa [#allocation6], 0
    %12 = vsyncpa [#allocation4], 0
    %s13 = scalar_lea.sflag [#allocation4], 1
    %14 = vsyncpa %s13, 0
    loop: start=0, step=1, limit=4
    $region2: #{tpu_custom_call.1} parent=1 // loop_pre_header
      _
    $region3: #{tpu_custom_call.1} parent=1 // loop_header
      %s16 = sphi 0, %s20
      %p17 = scmp.ge.s32.totalorder %s16, 4
      %s26 = sphi 0, %s28
      %s29 = sphi 0, %s26
      %s30 = sphi 0, %s29
      %s46 = sphi 0, %s30
      %s50 = sphi 0, %s50
      %s52 = sphi 0, %s50
      %s53 = sphi 0, %s52
      %s67 = sphi 0, %s53
      %s71 = sphi 0, %s71
      %s73 = sphi 0, %s71
      %s74 = sphi 0, %s73
      %s88 = sphi 0, %s74
      %s94 = sphi 0, %s96
      %s97 = sphi 0, %s94
      %s98 = sphi 0, %s97
      %s114 = sphi 0, %s98
    $region4: #{tpu_custom_call.1} parent=1 // loop_header_branch
      %19 = sbr.rel (%p17) target = $region8
    $region5: #{tpu_custom_call.1} parent=1 // loop_body
      %s21 = ssub.s32 %s16, 1
      %s22 = ssub.s32 %s16, 2
      %s23 = sadd.s32 %s16, 1
      %s24 = ssub.s32 %s16, %s23
      %p25 = scmp.eq.s32.totalorder %s24, 0
      %s27 = sadd.s32 %s26, 1
      %s28 = scalar_select %p25, %s26, %s27
      %p31 = pneg %p25
      %p32 = scmp.eq.s32.totalorder %s16, 1
      %p33 = por %p31, %p32
      %p34 = scmp.ne.s32.totalorder %s26, %s29
      %p35 = scmp.eq.s32.totalorder %s16, 0
      %p36 = por %p34, %p35
      %p37 = scmp.ne.s32.totalorder %s26, %s29
      %p38 = scmp.eq.s32.totalorder %s21, 1
      %p39 = por %p37, %p38
      %p40 = scmp.ne.s32.totalorder %s29, %s30
      %p41 = scmp.eq.s32.totalorder %s21, 0
      %p42 = por %p40, %p41
      %p43 = scmp.ne.s32.totalorder %s29, %s30
      %p44 = scmp.eq.s32.totalorder %s22, 1
      %p45 = por %p43, %p44
      %p47 = scmp.ne.s32.totalorder %s30, %s46
      %p48 = scmp.eq.s32.totalorder %s22, 0
      %p49 = por %p47, %p48
      %s51 = sadd.s32 %s50, 1
      %p54 = scmp.eq.s32.totalorder %s16, 1
      %p55 = scmp.ne.s32.totalorder %s50, %s52
      %p56 = scmp.eq.s32.totalorder %s16, 0
      %p57 = por %p55, %p56
      %p58 = scmp.ne.s32.totalorder %s50, %s52
      %p59 = scmp.eq.s32.totalorder %s21, 1
      %p60 = por %p58, %p59
      %p61 = scmp.ne.s32.totalorder %s52, %s53
      %p62 = scmp.eq.s32.totalorder %s21, 0
      %p63 = por %p61, %p62
      %p64 = scmp.ne.s32.totalorder %s52, %s53
      %p65 = scmp.eq.s32.totalorder %s22, 1
      %p66 = por %p64, %p65
      %p68 = scmp.ne.s32.totalorder %s53, %s67
      %p69 = scmp.eq.s32.totalorder %s22, 0
      %p70 = por %p68, %p69
      %s72 = sadd.s32 %s71, 1
      %p75 = scmp.eq.s32.totalorder %s16, 1
      %p76 = scmp.ne.s32.totalorder %s71, %s73
      %p77 = scmp.eq.s32.totalorder %s16, 0
      %p78 = por %p76, %p77
      %p79 = scmp.ne.s32.totalorder %s71, %s73
      %p80 = scmp.eq.s32.totalorder %s21, 1
      %p81 = por %p79, %p80
      %p82 = scmp.ne.s32.totalorder %s73, %s74
      %p83 = scmp.eq.s32.totalorder %s21, 0
      %p84 = por %p82, %p83
      %p85 = scmp.ne.s32.totalorder %s73, %s74
      %p86 = scmp.eq.s32.totalorder %s22, 1
      %p87 = por %p85, %p86
      %p89 = scmp.ne.s32.totalorder %s74, %s88
      %p90 = scmp.eq.s32.totalorder %s22, 0
      %p91 = por %p89, %p90
      %s92 = ssub.s32 %s16, %s23
      %p93 = scmp.eq.s32.totalorder %s92, 0
      %s95 = sadd.s32 %s94, 1
      %s96 = scalar_select %p93, %s94, %s95
      %p99 = pneg %p93
      %p100 = scmp.eq.s32.totalorder %s16, 1
      %p101 = por %p99, %p100
      %p102 = scmp.ne.s32.totalorder %s94, %s97
      %p103 = scmp.eq.s32.totalorder %s16, 0
      %p104 = por %p102, %p103
      %p105 = scmp.ne.s32.totalorder %s94, %s97
      %p106 = scmp.eq.s32.totalorder %s21, 1
      %p107 = por %p105, %p106
      %p108 = scmp.ne.s32.totalorder %s97, %s98
      %p109 = scmp.eq.s32.totalorder %s21, 0
      %p110 = por %p108, %p109
      %p111 = scmp.ne.s32.totalorder %s97, %s98
      %p112 = scmp.eq.s32.totalorder %s22, 1
      %p113 = por %p111, %p112
      %p115 = scmp.ne.s32.totalorder %s98, %s114
      %p116 = scmp.eq.s32.totalorder %s22, 0
      %p117 = por %p115, %p116
      %p118 = scmp.le.s32.totalorder 1, %s16
      %p119 = scmp.lt.s32.totalorder %s16, 3
      %p120 = pnand %p118, %p119
      %p121 = pneg %p120
      // Predicated region
      $region9: #{tpu_custom_call.1} parent=5 // pred_check
        _
      $region10: #{tpu_custom_call.1} parent=5 // pred_check_branch
        %123 = sbr.rel (%p120) target = $region12
      $region11: #{tpu_custom_call.1} parent=5 // pred_region
        %s124 = ssub.s32 %s16, 1
        // Predicated region
        $region13: #{tpu_custom_call.1} parent=11 // pred_check
          %p125 = pneg %p63
        $region14: #{tpu_custom_call.1} parent=11 // pred_check_branch
          %127 = sbr.rel (%p125) target = $region16
        $region15: #{tpu_custom_call.1} parent=11 // pred_region
          %129 = vsyncadd [#allocation6], 0
          %s130 = sshll.u32 %s1, 4
          %s131 = int_to_ptr.hbm [resolvable:$true] %s130
          %s132 = sshll.u32 [#allocation5], 4
          %s133 = int_to_ptr.vmem [resolvable:$true] %s132
          %138 = dma.hbm_to_vmem [thread:$0]  %s131, 2048, %s133, [#allocation6], 128, 128, 8
        $region16: #{tpu_custom_call.1} parent=11 // pred_fallthru
          _
        // Predicated region
        $region17: #{tpu_custom_call.1} parent=11 // pred_check
          %p139 = pneg %p84
        $region18: #{tpu_custom_call.1} parent=11 // pred_check_branch
          %141 = sbr.rel (%p139) target = $region20
        $region19: #{tpu_custom_call.1} parent=11 // pred_region
          %143 = vsyncadd [#allocation6], 0
          %s144 = sshll.u32 %s2, 4
          %s145 = int_to_ptr.hbm [resolvable:$true] %s144
          %s146 = sshll.u32 [#allocation7], 4
          %s147 = int_to_ptr.vmem [resolvable:$true] %s146
          %152 = dma.hbm_to_vmem [thread:$0]  %s145, 2048, %s147, [#allocation6], 128, 128, 8
        $region20: #{tpu_custom_call.1} parent=11 // pred_fallthru
          _
      $region12: #{tpu_custom_call.1} parent=5 // pred_fallthru
        _
      %p153 = scmp.lt.s32.totalorder %s16, 2
      // Predicated region
      $region21: #{tpu_custom_call.1} parent=5 // pred_check
        %p154 = pneg %p153
      $region22: #{tpu_custom_call.1} parent=5 // pred_check_branch
        %156 = sbr.rel (%p154) target = $region24
      $region23: #{tpu_custom_call.1} parent=5 // pred_region
        // Predicated region
        $region25: #{tpu_custom_call.1} parent=23 // pred_check
          %p157 = pneg %p36
        $region26: #{tpu_custom_call.1} parent=23 // pred_check_branch
          %159 = sbr.rel (%p157) target = $region28
        $region27: #{tpu_custom_call.1} parent=23 // pred_region
          %s160 = sand.u32 %s26, 1
          %s161 = scalar_lea.sflag [#allocation3], %s160
          %s162 = sand.u32 %s26, 1
          %s163 = smul.addr %s162, 128
          %s164 = scalar_lea.vmem [#allocation2], %s163
          %166 = vsyncadd %s161, 0
          %s167 = smul.addr %s16, 16
          %s168 = smul.addr %s167, 8
          %s169 = scalar_lea.hbm %s0, %s168
          %s170 = sshll.u32 %s169, 4
          %s171 = int_to_ptr.hbm [resolvable:$true] %s170
          %s172 = sshll.u32 %s164, 4
          %s173 = int_to_ptr.vmem [resolvable:$true] %s172
          %178 = dma.hbm_to_vmem [thread:$0]  %s171, 2048, %s173, %s161, 128, 128, 8
        $region28: #{tpu_custom_call.1} parent=23 // pred_fallthru
          _
      $region24: #{tpu_custom_call.1} parent=5 // pred_fallthru
        _
      %p179 = scmp.le.s32.totalorder 1, %s16
      %p180 = scmp.lt.s32.totalorder %s16, 3
      %p181 = pnand %p179, %p180
      %p182 = pneg %p181
      // Predicated region
      $region29: #{tpu_custom_call.1} parent=5 // pred_check
        _
      $region30: #{tpu_custom_call.1} parent=5 // pred_check_branch
        %184 = sbr.rel (%p181) target = $region32
      $region31: #{tpu_custom_call.1} parent=5 // pred_region
        %s185 = ssub.s32 %s16, 1
        %s186 = sand.u32 %s29, 1
        %s187 = scalar_lea.sflag [#allocation3], %s186
        %s188 = sand.u32 %s29, 1
        %s189 = smul.addr %s188, 128
        %s190 = scalar_lea.vmem [#allocation2], %s189
        // Predicated region
        $region33: #{tpu_custom_call.1} parent=31 // pred_check
          %p191 = pneg %p42
        $region34: #{tpu_custom_call.1} parent=31 // pred_check_branch
          %193 = sbr.rel (%p191) target = $region36
        $region35: #{tpu_custom_call.1} parent=31 // pred_region
          %195 = dma.done %s187, 2048
        $region36: #{tpu_custom_call.1} parent=31 // pred_fallthru
          _
        // Predicated region
        $region37: #{tpu_custom_call.1} parent=31 // pred_check
          %p196 = pneg %p63
        $region38: #{tpu_custom_call.1} parent=31 // pred_check_branch
          %198 = sbr.rel (%p196) target = $region40
        $region39: #{tpu_custom_call.1} parent=31 // pred_region
          %200 = dma.done [#allocation6], 2048
        $region40: #{tpu_custom_call.1} parent=31 // pred_fallthru
          _
        // Predicated region
        $region41: #{tpu_custom_call.1} parent=31 // pred_check
          %p201 = pneg %p84
        $region42: #{tpu_custom_call.1} parent=31 // pred_check_branch
          %203 = sbr.rel (%p201) target = $region44
        $region43: #{tpu_custom_call.1} parent=31 // pred_region
          %205 = dma.done [#allocation6], 2048
        $region44: #{tpu_custom_call.1} parent=31 // pred_fallthru
          _
        %s206 = sand.u32 %s29, 1
        %s207 = scalar_lea.sflag [#allocation3], %s206
        %s208 = sand.u32 %s29, 1
        %s209 = smul.addr %s208, 128
        %s210 = scalar_lea.vmem [#allocation2], %s209
        %p211 = pneg %p42
        %p212 = pneg %p39
        %p213 = pneg %p63
        %p214 = pneg %p60
        %p215 = pneg %p84
        %p216 = pneg %p81
        %p217 = pneg %p110
        %p218 = pneg %p107
        %s219 = sand.u32 %s97, 1
        %s220 = scalar_lea.sflag [#allocation4], %s219
        %s221 = sand.u32 %s97, 1
        %s222 = smul.addr %s221, 128
        %s223 = scalar_lea.vmem [#allocation8], %s222
        %v224 = vld [vmem:[#allocation5] sm:$0xff]
        %v225 = vld [vmem:[#allocation5 + $0x8] sm:$0xff]
        %v226 = vld [vmem:[#allocation5 + $0x10] sm:$0xff]
        %v227 = vld [vmem:[#allocation5 + $0x18] sm:$0xff]
        %v228 = vld [vmem:[#allocation5 + $0x20] sm:$0xff]
        %v229 = vld [vmem:[#allocation5 + $0x28] sm:$0xff]
        %v230 = vld [vmem:[#allocation5 + $0x30] sm:$0xff]
        %v231 = vld [vmem:[#allocation5 + $0x38] sm:$0xff]
        %v232 = vld [vmem:[#allocation5 + $0x40] sm:$0xff]
        %v233 = vld [vmem:[#allocation5 + $0x48] sm:$0xff]
        %v234 = vld [vmem:[#allocation5 + $0x50] sm:$0xff]
        %v235 = vld [vmem:[#allocation5 + $0x58] sm:$0xff]
        %v236 = vld [vmem:[#allocation5 + $0x60] sm:$0xff]
        %v237 = vld [vmem:[#allocation5 + $0x68] sm:$0xff]
        %v238 = vld [vmem:[#allocation5 + $0x70] sm:$0xff]
        %v239 = vld [vmem:[#allocation5 + $0x78] sm:$0xff]
        %v240 = vld [vmem:[#allocation7] sm:$0xff]
        %v241 = vld [vmem:[#allocation7 + $0x8] sm:$0xff]
        %v242 = vld [vmem:[#allocation7 + $0x10] sm:$0xff]
        %v243 = vld [vmem:[#allocation7 + $0x18] sm:$0xff]
        %v244 = vld [vmem:[#allocation7 + $0x20] sm:$0xff]
        %v245 = vld [vmem:[#allocation7 + $0x28] sm:$0xff]
        %v246 = vld [vmem:[#allocation7 + $0x30] sm:$0xff]
        %v247 = vld [vmem:[#allocation7 + $0x38] sm:$0xff]
        %v248 = vld [vmem:[#allocation7 + $0x40] sm:$0xff]
        %v249 = vld [vmem:[#allocation7 + $0x48] sm:$0xff]
        %v250 = vld [vmem:[#allocation7 + $0x50] sm:$0xff]
        %v251 = vld [vmem:[#allocation7 + $0x58] sm:$0xff]
        %v252 = vld [vmem:[#allocation7 + $0x60] sm:$0xff]
        %v253 = vld [vmem:[#allocation7 + $0x68] sm:$0xff]
        %v254 = vld [vmem:[#allocation7 + $0x70] sm:$0xff]
        %v255 = vld [vmem:[#allocation7 + $0x78] sm:$0xff]
        %v256 = vld [vmem:[%s190] sm:$0xff]
        %v257 = vld [vmem:[%s190 + $0x8] sm:$0xff]
        %v258 = vld [vmem:[%s190 + $0x10] sm:$0xff]
        %v259 = vld [vmem:[%s190 + $0x18] sm:$0xff]
        %v260 = vld [vmem:[%s190 + $0x20] sm:$0xff]
        %v261 = vld [vmem:[%s190 + $0x28] sm:$0xff]
        %v262 = vld [vmem:[%s190 + $0x30] sm:$0xff]
        %v263 = vld [vmem:[%s190 + $0x38] sm:$0xff]
        %v264 = vld [vmem:[%s190 + $0x40] sm:$0xff]
        %v265 = vld [vmem:[%s190 + $0x48] sm:$0xff]
        %v266 = vld [vmem:[%s190 + $0x50] sm:$0xff]
        %v267 = vld [vmem:[%s190 + $0x58] sm:$0xff]
        %v268 = vld [vmem:[%s190 + $0x60] sm:$0xff]
        %v269 = vld [vmem:[%s190 + $0x68] sm:$0xff]
        %v270 = vld [vmem:[%s190 + $0x70] sm:$0xff]
        %v271 = vld [vmem:[%s190 + $0x78] sm:$0xff]
        %v272 = vmax.f32 %v256, 0.0
        %v273 = vmax.f32 %v257, 0.0
        %v274 = vmax.f32 %v258, 0.0
        %v275 = vmax.f32 %v259, 0.0
        %v276 = vmax.f32 %v260, 0.0
        %v277 = vmax.f32 %v261, 0.0
        %v278 = vmax.f32 %v262, 0.0
        %v279 = vmax.f32 %v263, 0.0
        %v280 = vmax.f32 %v264, 0.0
        %v281 = vmax.f32 %v265, 0.0
        %v282 = vmax.f32 %v266, 0.0
        %v283 = vmax.f32 %v267, 0.0
        %v284 = vmax.f32 %v268, 0.0
        %v285 = vmax.f32 %v269, 0.0
        %v286 = vmax.f32 %v270, 0.0
        %v287 = vmax.f32 %v271, 0.0
        %v288 = vand.u32 %v255, 4294901760
        %289 = vmatpush.msra.mxu0 %v288
        %v290 = vand.u32 %v254, 4294901760
        %291 = vmatpush.msra.mxu0 %v290
        %v292 = vand.u32 %v253, 4294901760
        %293 = vmatpush.msra.mxu0 %v292
        %v294 = vand.u32 %v252, 4294901760
        %295 = vmatpush.msra.mxu0 %v294
        %v296 = vand.u32 %v251, 4294901760
        %297 = vmatpush.msra.mxu0 %v296
        %v298 = vand.u32 %v250, 4294901760
        %299 = vmatpush.msra.mxu0 %v298
        %v300 = vand.u32 %v249, 4294901760
        %301 = vmatpush.msra.mxu0 %v300
        %v302 = vand.u32 %v248, 4294901760
        %303 = vmatpush.msra.mxu0 %v302
        %v304 = vand.u32 %v247, 4294901760
        %305 = vmatpush.msra.mxu0 %v304
        %v306 = vand.u32 %v246, 4294901760
        %307 = vmatpush.msra.mxu0 %v306
        %v308 = vand.u32 %v245, 4294901760
        %309 = vmatpush.msra.mxu0 %v308
        %v310 = vand.u32 %v244, 4294901760
        %311 = vmatpush.msra.mxu0 %v310
        %v312 = vand.u32 %v243, 4294901760
        %313 = vmatpush.msra.mxu0 %v312
        %v314 = vand.u32 %v242, 4294901760
        %315 = vmatpush.msra.mxu0 %v314
        %v316 = vand.u32 %v241, 4294901760
        %317 = vmatpush.msra.mxu0 %v316
        %v318 = vand.u32 %v240, 4294901760
        %319 = vmatpush.msra.mxu0 %v318
        %v320 = vand.u32 %v272, 4294901760
        %v321 = vsub.f32 %v272, %v320
        %v322 = vand.u32 %v321, 4294901760
        %v323 = vsub.f32 %v321, %v322
        %v324 = vand.u32 %v323, 4294901760
        %325 = vmatmul.f32.gmra.mxu0 %v324
        %v326 = vpop.f32.mrf.mxu0
        %v327 = vadd.f32 0.0, %v326
        %v328 = vand.u32 %v273, 4294901760
        %v329 = vsub.f32 %v273, %v328
        %v330 = vand.u32 %v329, 4294901760
        %v331 = vsub.f32 %v329, %v330
        %v332 = vand.u32 %v331, 4294901760
        %333 = vmatmul.f32.gmra.mxu0 %v332
        %v334 = vpop.f32.mrf.mxu0
        %v335 = vadd.f32 0.0, %v334
        %v336 = vand.u32 %v274, 4294901760
        %v337 = vsub.f32 %v274, %v336
        %v338 = vand.u32 %v337, 4294901760
        %v339 = vsub.f32 %v337, %v338
        %v340 = vand.u32 %v339, 4294901760
        %341 = vmatmul.f32.gmra.mxu0 %v340
        %v342 = vpop.f32.mrf.mxu0
        %v343 = vadd.f32 0.0, %v342
        %v344 = vand.u32 %v275, 4294901760
        %v345 = vsub.f32 %v275, %v344
        %v346 = vand.u32 %v345, 4294901760
        %v347 = vsub.f32 %v345, %v346
        %v348 = vand.u32 %v347, 4294901760
        %349 = vmatmul.f32.gmra.mxu0 %v348
        %v350 = vpop.f32.mrf.mxu0
        %v351 = vadd.f32 0.0, %v350
        %v352 = vand.u32 %v276, 4294901760
        %v353 = vsub.f32 %v276, %v352
        %v354 = vand.u32 %v353, 4294901760
        %v355 = vsub.f32 %v353, %v354
        %v356 = vand.u32 %v355, 4294901760
        %357 = vmatmul.f32.gmra.mxu0 %v356
        %v358 = vpop.f32.mrf.mxu0
        %v359 = vadd.f32 0.0, %v358
        %v360 = vand.u32 %v277, 4294901760
        %v361 = vsub.f32 %v277, %v360
        %v362 = vand.u32 %v361, 4294901760
        %v363 = vsub.f32 %v361, %v362
        %v364 = vand.u32 %v363, 4294901760
        %365 = vmatmul.f32.gmra.mxu0 %v364
        %v366 = vpop.f32.mrf.mxu0
        %v367 = vadd.f32 0.0, %v366
        %v368 = vand.u32 %v278, 4294901760
        %v369 = vsub.f32 %v278, %v368
        %v370 = vand.u32 %v369, 4294901760
        %v371 = vsub.f32 %v369, %v370
        %v372 = vand.u32 %v371, 4294901760
        %373 = vmatmul.f32.gmra.mxu0 %v372
        %v374 = vpop.f32.mrf.mxu0
        %v375 = vadd.f32 0.0, %v374
        %v376 = vand.u32 %v279, 4294901760
        %v377 = vsub.f32 %v279, %v376
        %v378 = vand.u32 %v377, 4294901760
        %v379 = vsub.f32 %v377, %v378
        %v380 = vand.u32 %v379, 4294901760
        %381 = vmatmul.f32.gmra.mxu0 %v380
        %v382 = vpop.f32.mrf.mxu0
        %v383 = vadd.f32 0.0, %v382
        %v384 = vand.u32 %v280, 4294901760
        %v385 = vsub.f32 %v280, %v384
        %v386 = vand.u32 %v385, 4294901760
        %v387 = vsub.f32 %v385, %v386
        %v388 = vand.u32 %v387, 4294901760
        %389 = vmatmul.f32.gmra.mxu0 %v388
        %v390 = vpop.f32.mrf.mxu0
        %v391 = vadd.f32 0.0, %v390
        %v392 = vand.u32 %v281, 4294901760
        %v393 = vsub.f32 %v281, %v392
        %v394 = vand.u32 %v393, 4294901760
        %v395 = vsub.f32 %v393, %v394
        %v396 = vand.u32 %v395, 4294901760
        %397 = vmatmul.f32.gmra.mxu0 %v396
        %v398 = vpop.f32.mrf.mxu0
        %v399 = vadd.f32 0.0, %v398
        %v400 = vand.u32 %v282, 4294901760
        %v401 = vsub.f32 %v282, %v400
        %v402 = vand.u32 %v401, 4294901760
        %v403 = vsub.f32 %v401, %v402
        %v404 = vand.u32 %v403, 4294901760
        %405 = vmatmul.f32.gmra.mxu0 %v404
        %v406 = vpop.f32.mrf.mxu0
        %v407 = vadd.f32 0.0, %v406
        %v408 = vand.u32 %v283, 4294901760
        %v409 = vsub.f32 %v283, %v408
        %v410 = vand.u32 %v409, 4294901760
        %v411 = vsub.f32 %v409, %v410
        %v412 = vand.u32 %v411, 4294901760
        %413 = vmatmul.f32.gmra.mxu0 %v412
        %v414 = vpop.f32.mrf.mxu0
        %v415 = vadd.f32 0.0, %v414
        %v416 = vand.u32 %v284, 4294901760
        %v417 = vsub.f32 %v284, %v416
        %v418 = vand.u32 %v417, 4294901760
        %v419 = vsub.f32 %v417, %v418
        %v420 = vand.u32 %v419, 4294901760
        %421 = vmatmul.f32.gmra.mxu0 %v420
        %v422 = vpop.f32.mrf.mxu0
        %v423 = vadd.f32 0.0, %v422
        %v424 = vand.u32 %v285, 4294901760
        %v425 = vsub.f32 %v285, %v424
        %v426 = vand.u32 %v425, 4294901760
        %v427 = vsub.f32 %v425, %v426
        %v428 = vand.u32 %v427, 4294901760
        %429 = vmatmul.f32.gmra.mxu0 %v428
        %v430 = vpop.f32.mrf.mxu0
        %v431 = vadd.f32 0.0, %v430
        %v432 = vand.u32 %v286, 4294901760
        %v433 = vsub.f32 %v286, %v432
        %v434 = vand.u32 %v433, 4294901760
        %v435 = vsub.f32 %v433, %v434
        %v436 = vand.u32 %v435, 4294901760
        %437 = vmatmul.f32.gmra.mxu0 %v436
        %v438 = vpop.f32.mrf.mxu0
        %v439 = vadd.f32 0.0, %v438
        %v440 = vand.u32 %v287, 4294901760
        %v441 = vsub.f32 %v287, %v440
        %v442 = vand.u32 %v441, 4294901760
        %v443 = vsub.f32 %v441, %v442
        %v444 = vand.u32 %v443, 4294901760
        %445 = vmatmul.f32.gmra.mxu0 %v444
        %v446 = vpop.f32.mrf.mxu0
        %v447 = vadd.f32 0.0, %v446
        %448 = vdwg.mxu0
        %v449 = vand.u32 %v255, 4294901760
        %v450 = vsub.f32 %v255, %v449
        %v451 = vand.u32 %v450, 4294901760
        %v452 = vsub.f32 %v450, %v451
        %v453 = vand.u32 %v452, 4294901760
        %454 = vmatpush.msra.mxu0 %v453
        %v455 = vand.u32 %v254, 4294901760
        %v456 = vsub.f32 %v254, %v455
        %v457 = vand.u32 %v456, 4294901760
        %v458 = vsub.f32 %v456, %v457
        %v459 = vand.u32 %v458, 4294901760
        %460 = vmatpush.msra.mxu0 %v459
        %v461 = vand.u32 %v253, 4294901760
        %v462 = vsub.f32 %v253, %v461
        %v463 = vand.u32 %v462, 4294901760
        %v464 = vsub.f32 %v462, %v463
        %v465 = vand.u32 %v464, 4294901760
        %466 = vmatpush.msra.mxu0 %v465
        %v467 = vand.u32 %v252, 4294901760
        %v468 = vsub.f32 %v252, %v467
        %v469 = vand.u32 %v468, 4294901760
        %v470 = vsub.f32 %v468, %v469
        %v471 = vand.u32 %v470, 4294901760
        %472 = vmatpush.msra.mxu0 %v471
        %v473 = vand.u32 %v251, 4294901760
        %v474 = vsub.f32 %v251, %v473
        %v475 = vand.u32 %v474, 4294901760
        %v476 = vsub.f32 %v474, %v475
        %v477 = vand.u32 %v476, 4294901760
        %478 = vmatpush.msra.mxu0 %v477
        %v479 = vand.u32 %v250, 4294901760
        %v480 = vsub.f32 %v250, %v479
        %v481 = vand.u32 %v480, 4294901760
        %v482 = vsub.f32 %v480, %v481
        %v483 = vand.u32 %v482, 4294901760
        %484 = vmatpush.msra.mxu0 %v483
        %v485 = vand.u32 %v249, 4294901760
        %v486 = vsub.f32 %v249, %v485
        %v487 = vand.u32 %v486, 4294901760
        %v488 = vsub.f32 %v486, %v487
        %v489 = vand.u32 %v488, 4294901760
        %490 = vmatpush.msra.mxu0 %v489
        %v491 = vand.u32 %v248, 4294901760
        %v492 = vsub.f32 %v248, %v491
        %v493 = vand.u32 %v492, 4294901760
        %v494 = vsub.f32 %v492, %v493
        %v495 = vand.u32 %v494, 4294901760
        %496 = vmatpush.msra.mxu0 %v495
        %v497 = vand.u32 %v247, 4294901760
        %v498 = vsub.f32 %v247, %v497
        %v499 = vand.u32 %v498, 4294901760
        %v500 = vsub.f32 %v498, %v499
        %v501 = vand.u32 %v500, 4294901760
        %502 = vmatpush.msra.mxu0 %v501
        %v503 = vand.u32 %v246, 4294901760
        %v504 = vsub.f32 %v246, %v503
        %v505 = vand.u32 %v504, 4294901760
        %v506 = vsub.f32 %v504, %v505
        %v507 = vand.u32 %v506, 4294901760
        %508 = vmatpush.msra.mxu0 %v507
        %v509 = vand.u32 %v245, 4294901760
        %v510 = vsub.f32 %v245, %v509
        %v511 = vand.u32 %v510, 4294901760
        %v512 = vsub.f32 %v510, %v511
        %v513 = vand.u32 %v512, 4294901760
        %514 = vmatpush.msra.mxu0 %v513
        %v515 = vand.u32 %v244, 4294901760
        %v516 = vsub.f32 %v244, %v515
        %v517 = vand.u32 %v516, 4294901760
        %v518 = vsub.f32 %v516, %v517
        %v519 = vand.u32 %v518, 4294901760
        %520 = vmatpush.msra.mxu0 %v519
        %v521 = vand.u32 %v243, 4294901760
        %v522 = vsub.f32 %v243, %v521
        %v523 = vand.u32 %v522, 4294901760
        %v524 = vsub.f32 %v522, %v523
        %v525 = vand.u32 %v524, 4294901760
        %526 = vmatpush.msra.mxu0 %v525
        %v527 = vand.u32 %v242, 4294901760
        %v528 = vsub.f32 %v242, %v527
        %v529 = vand.u32 %v528, 4294901760
        %v530 = vsub.f32 %v528, %v529
        %v531 = vand.u32 %v530, 4294901760
        %532 = vmatpush.msra.mxu0 %v531
        %v533 = vand.u32 %v241, 4294901760
        %v534 = vsub.f32 %v241, %v533
        %v535 = vand.u32 %v534, 4294901760
        %v536 = vsub.f32 %v534, %v535
        %v537 = vand.u32 %v536, 4294901760
        %538 = vmatpush.msra.mxu0 %v537
        %v539 = vand.u32 %v240, 4294901760
        %v540 = vsub.f32 %v240, %v539
        %v541 = vand.u32 %v540, 4294901760
        %v542 = vsub.f32 %v540, %v541
        %v543 = vand.u32 %v542, 4294901760
        %544 = vmatpush.msra.mxu0 %v543
        %v545 = vand.u32 %v272, 4294901760
        %546 = vmatmul.f32.gmra.mxu0 %v545
        %v547 = vpop.f32.mrf.mxu0
        %v548 = vadd.f32 %v327, %v547
        %v549 = vand.u32 %v273, 4294901760
        %550 = vmatmul.f32.gmra.mxu0 %v549
        %v551 = vpop.f32.mrf.mxu0
        %v552 = vadd.f32 %v335, %v551
        %v553 = vand.u32 %v274, 4294901760
        %554 = vmatmul.f32.gmra.mxu0 %v553
        %v555 = vpop.f32.mrf.mxu0
        %v556 = vadd.f32 %v343, %v555
        %v557 = vand.u32 %v275, 4294901760
        %558 = vmatmul.f32.gmra.mxu0 %v557
        %v559 = vpop.f32.mrf.mxu0
        %v560 = vadd.f32 %v351, %v559
        %v561 = vand.u32 %v276, 4294901760
        %562 = vmatmul.f32.gmra.mxu0 %v561
        %v563 = vpop.f32.mrf.mxu0
        %v564 = vadd.f32 %v359, %v563
        %v565 = vand.u32 %v277, 4294901760
        %566 = vmatmul.f32.gmra.mxu0 %v565
        %v567 = vpop.f32.mrf.mxu0
        %v568 = vadd.f32 %v367, %v567
        %v569 = vand.u32 %v278, 4294901760
        %570 = vmatmul.f32.gmra.mxu0 %v569
        %v571 = vpop.f32.mrf.mxu0
        %v572 = vadd.f32 %v375, %v571
        %v573 = vand.u32 %v279, 4294901760
        %574 = vmatmul.f32.gmra.mxu0 %v573
        %v575 = vpop.f32.mrf.mxu0
        %v576 = vadd.f32 %v383, %v575
        %v577 = vand.u32 %v280, 4294901760
        %578 = vmatmul.f32.gmra.mxu0 %v577
        %v579 = vpop.f32.mrf.mxu0
        %v580 = vadd.f32 %v391, %v579
        %v581 = vand.u32 %v281, 4294901760
        %582 = vmatmul.f32.gmra.mxu0 %v581
        %v583 = vpop.f32.mrf.mxu0
        %v584 = vadd.f32 %v399, %v583
        %v585 = vand.u32 %v282, 4294901760
        %586 = vmatmul.f32.gmra.mxu0 %v585
        %v587 = vpop.f32.mrf.mxu0
        %v588 = vadd.f32 %v407, %v587
        %v589 = vand.u32 %v283, 4294901760
        %590 = vmatmul.f32.gmra.mxu0 %v589
        %v591 = vpop.f32.mrf.mxu0
        %v592 = vadd.f32 %v415, %v591
        %v593 = vand.u32 %v284, 4294901760
        %594 = vmatmul.f32.gmra.mxu0 %v593
        %v595 = vpop.f32.mrf.mxu0
        %v596 = vadd.f32 %v423, %v595
        %v597 = vand.u32 %v285, 4294901760
        %598 = vmatmul.f32.gmra.mxu0 %v597
        %v599 = vpop.f32.mrf.mxu0
        %v600 = vadd.f32 %v431, %v599
        %v601 = vand.u32 %v286, 4294901760
        %602 = vmatmul.f32.gmra.mxu0 %v601
        %v603 = vpop.f32.mrf.mxu0
        %v604 = vadd.f32 %v439, %v603
        %v605 = vand.u32 %v287, 4294901760
        %606 = vmatmul.f32.gmra.mxu0 %v605
        %v607 = vpop.f32.mrf.mxu0
        %v608 = vadd.f32 %v447, %v607
        %609 = vdwg.mxu0
        %v610 = vand.u32 %v255, 4294901760
        %v611 = vsub.f32 %v255, %v610
        %612 = vmatpush.msra.mxu0 %v611
        %v613 = vand.u32 %v254, 4294901760
        %v614 = vsub.f32 %v254, %v613
        %615 = vmatpush.msra.mxu0 %v614
        %v616 = vand.u32 %v253, 4294901760
        %v617 = vsub.f32 %v253, %v616
        %618 = vmatpush.msra.mxu0 %v617
        %v619 = vand.u32 %v252, 4294901760
        %v620 = vsub.f32 %v252, %v619
        %621 = vmatpush.msra.mxu0 %v620
        %v622 = vand.u32 %v251, 4294901760
        %v623 = vsub.f32 %v251, %v622
        %624 = vmatpush.msra.mxu0 %v623
        %v625 = vand.u32 %v250, 4294901760
        %v626 = vsub.f32 %v250, %v625
        %627 = vmatpush.msra.mxu0 %v626
        %v628 = vand.u32 %v249, 4294901760
        %v629 = vsub.f32 %v249, %v628
        %630 = vmatpush.msra.mxu0 %v629
        %v631 = vand.u32 %v248, 4294901760
        %v632 = vsub.f32 %v248, %v631
        %633 = vmatpush.msra.mxu0 %v632
        %v634 = vand.u32 %v247, 4294901760
        %v635 = vsub.f32 %v247, %v634
        %636 = vmatpush.msra.mxu0 %v635
        %v637 = vand.u32 %v246, 4294901760
        %v638 = vsub.f32 %v246, %v637
        %639 = vmatpush.msra.mxu0 %v638
        %v640 = vand.u32 %v245, 4294901760
        %v641 = vsub.f32 %v245, %v640
        %642 = vmatpush.msra.mxu0 %v641
        %v643 = vand.u32 %v244, 4294901760
        %v644 = vsub.f32 %v244, %v643
        %645 = vmatpush.msra.mxu0 %v644
        %v646 = vand.u32 %v243, 4294901760
        %v647 = vsub.f32 %v243, %v646
        %648 = vmatpush.msra.mxu0 %v647
        %v649 = vand.u32 %v242, 4294901760
        %v650 = vsub.f32 %v242, %v649
        %651 = vmatpush.msra.mxu0 %v650
        %v652 = vand.u32 %v241, 4294901760
        %v653 = vsub.f32 %v241, %v652
        %654 = vmatpush.msra.mxu0 %v653
        %v655 = vand.u32 %v240, 4294901760
        %v656 = vsub.f32 %v240, %v655
        %657 = vmatpush.msra.mxu0 %v656
        %v658 = vand.u32 %v272, 4294901760
        %v659 = vsub.f32 %v272, %v658
        %660 = vmatmul.f32.gmra.mxu0 %v659
        %v661 = vpop.f32.mrf.mxu0
        %v662 = vadd.f32 %v548, %v661
        %v663 = vand.u32 %v273, 4294901760
        %v664 = vsub.f32 %v273, %v663
        %665 = vmatmul.f32.gmra.mxu0 %v664
        %v666 = vpop.f32.mrf.mxu0
        %v667 = vadd.f32 %v552, %v666
        %v668 = vand.u32 %v274, 4294901760
        %v669 = vsub.f32 %v274, %v668
        %670 = vmatmul.f32.gmra.mxu0 %v669
        %v671 = vpop.f32.mrf.mxu0
        %v672 = vadd.f32 %v556, %v671
        %v673 = vand.u32 %v275, 4294901760
        %v674 = vsub.f32 %v275, %v673
        %675 = vmatmul.f32.gmra.mxu0 %v674
        %v676 = vpop.f32.mrf.mxu0
        %v677 = vadd.f32 %v560, %v676
        %v678 = vand.u32 %v276, 4294901760
        %v679 = vsub.f32 %v276, %v678
        %680 = vmatmul.f32.gmra.mxu0 %v679
        %v681 = vpop.f32.mrf.mxu0
        %v682 = vadd.f32 %v564, %v681
        %v683 = vand.u32 %v277, 4294901760
        %v684 = vsub.f32 %v277, %v683
        %685 = vmatmul.f32.gmra.mxu0 %v684
        %v686 = vpop.f32.mrf.mxu0
        %v687 = vadd.f32 %v568, %v686
        %v688 = vand.u32 %v278, 4294901760
        %v689 = vsub.f32 %v278, %v688
        %690 = vmatmul.f32.gmra.mxu0 %v689
        %v691 = vpop.f32.mrf.mxu0
        %v692 = vadd.f32 %v572, %v691
        %v693 = vand.u32 %v279, 4294901760
        %v694 = vsub.f32 %v279, %v693
        %695 = vmatmul.f32.gmra.mxu0 %v694
        %v696 = vpop.f32.mrf.mxu0
        %v697 = vadd.f32 %v576, %v696
        %v698 = vand.u32 %v280, 4294901760
        %v699 = vsub.f32 %v280, %v698
        %700 = vmatmul.f32.gmra.mxu0 %v699
        %v701 = vpop.f32.mrf.mxu0
        %v702 = vadd.f32 %v580, %v701
        %v703 = vand.u32 %v281, 4294901760
        %v704 = vsub.f32 %v281, %v703
        %705 = vmatmul.f32.gmra.mxu0 %v704
        %v706 = vpop.f32.mrf.mxu0
        %v707 = vadd.f32 %v584, %v706
        %v708 = vand.u32 %v282, 4294901760
        %v709 = vsub.f32 %v282, %v708
        %710 = vmatmul.f32.gmra.mxu0 %v709
        %v711 = vpop.f32.mrf.mxu0
        %v712 = vadd.f32 %v588, %v711
        %v713 = vand.u32 %v283, 4294901760
        %v714 = vsub.f32 %v283, %v713
        %715 = vmatmul.f32.gmra.mxu0 %v714
        %v716 = vpop.f32.mrf.mxu0
        %v717 = vadd.f32 %v592, %v716
        %v718 = vand.u32 %v284, 4294901760
        %v719 = vsub.f32 %v284, %v718
        %720 = vmatmul.f32.gmra.mxu0 %v719
        %v721 = vpop.f32.mrf.mxu0
        %v722 = vadd.f32 %v596, %v721
        %v723 = vand.u32 %v285, 4294901760
        %v724 = vsub.f32 %v285, %v723
        %725 = vmatmul.f32.gmra.mxu0 %v724
        %v726 = vpop.f32.mrf.mxu0
        %v727 = vadd.f32 %v600, %v726
        %v728 = vand.u32 %v286, 4294901760
        %v729 = vsub.f32 %v286, %v728
        %730 = vmatmul.f32.gmra.mxu0 %v729
        %v731 = vpop.f32.mrf.mxu0
        %v732 = vadd.f32 %v604, %v731
        %v733 = vand.u32 %v287, 4294901760
        %v734 = vsub.f32 %v287, %v733
        %735 = vmatmul.f32.gmra.mxu0 %v734
        %v736 = vpop.f32.mrf.mxu0
        %v737 = vadd.f32 %v608, %v736
        %738 = vdwg.mxu0
        %v739 = vand.u32 %v255, 4294901760
        %740 = vmatpush.msra.mxu0 %v739
        %v741 = vand.u32 %v254, 4294901760
        %742 = vmatpush.msra.mxu0 %v741
        %v743 = vand.u32 %v253, 4294901760
        %744 = vmatpush.msra.mxu0 %v743
        %v745 = vand.u32 %v252, 4294901760
        %746 = vmatpush.msra.mxu0 %v745
        %v747 = vand.u32 %v251, 4294901760
        %748 = vmatpush.msra.mxu0 %v747
        %v749 = vand.u32 %v250, 4294901760
        %750 = vmatpush.msra.mxu0 %v749
        %v751 = vand.u32 %v249, 4294901760
        %752 = vmatpush.msra.mxu0 %v751
        %v753 = vand.u32 %v248, 4294901760
        %754 = vmatpush.msra.mxu0 %v753
        %v755 = vand.u32 %v247, 4294901760
        %756 = vmatpush.msra.mxu0 %v755
        %v757 = vand.u32 %v246, 4294901760
        %758 = vmatpush.msra.mxu0 %v757
        %v759 = vand.u32 %v245, 4294901760
        %760 = vmatpush.msra.mxu0 %v759
        %v761 = vand.u32 %v244, 4294901760
        %762 = vmatpush.msra.mxu0 %v761
        %v763 = vand.u32 %v243, 4294901760
        %764 = vmatpush.msra.mxu0 %v763
        %v765 = vand.u32 %v242, 4294901760
        %766 = vmatpush.msra.mxu0 %v765
        %v767 = vand.u32 %v241, 4294901760
        %768 = vmatpush.msra.mxu0 %v767
        %v769 = vand.u32 %v240, 4294901760
        %770 = vmatpush.msra.mxu0 %v769
        %v771 = vand.u32 %v272, 4294901760
        %v772 = vsub.f32 %v272, %v771
        %v773 = vand.u32 %v772, 4294901760
        %774 = vmatmul.f32.gmra.mxu0 %v773
        %v775 = vpop.f32.mrf.mxu0
        %v776 = vadd.f32 %v662, %v775
        %v777 = vand.u32 %v273, 4294901760
        %v778 = vsub.f32 %v273, %v777
        %v779 = vand.u32 %v778, 4294901760
        %780 = vmatmul.f32.gmra.mxu0 %v779
        %v781 = vpop.f32.mrf.mxu0
        %v782 = vadd.f32 %v667, %v781
        %v783 = vand.u32 %v274, 4294901760
        %v784 = vsub.f32 %v274, %v783
        %v785 = vand.u32 %v784, 4294901760
        %786 = vmatmul.f32.gmra.mxu0 %v785
        %v787 = vpop.f32.mrf.mxu0
        %v788 = vadd.f32 %v672, %v787
        %v789 = vand.u32 %v275, 4294901760
        %v790 = vsub.f32 %v275, %v789
        %v791 = vand.u32 %v790, 4294901760
        %792 = vmatmul.f32.gmra.mxu0 %v791
        %v793 = vpop.f32.mrf.mxu0
        %v794 = vadd.f32 %v677, %v793
        %v795 = vand.u32 %v276, 4294901760
        %v796 = vsub.f32 %v276, %v795
        %v797 = vand.u32 %v796, 4294901760
        %798 = vmatmul.f32.gmra.mxu0 %v797
        %v799 = vpop.f32.mrf.mxu0
        %v800 = vadd.f32 %v682, %v799
        %v801 = vand.u32 %v277, 4294901760
        %v802 = vsub.f32 %v277, %v801
        %v803 = vand.u32 %v802, 4294901760
        %804 = vmatmul.f32.gmra.mxu0 %v803
        %v805 = vpop.f32.mrf.mxu0
        %v806 = vadd.f32 %v687, %v805
        %v807 = vand.u32 %v278, 4294901760
        %v808 = vsub.f32 %v278, %v807
        %v809 = vand.u32 %v808, 4294901760
        %810 = vmatmul.f32.gmra.mxu0 %v809
        %v811 = vpop.f32.mrf.mxu0
        %v812 = vadd.f32 %v692, %v811
        %v813 = vand.u32 %v279, 4294901760
        %v814 = vsub.f32 %v279, %v813
        %v815 = vand.u32 %v814, 4294901760
        %816 = vmatmul.f32.gmra.mxu0 %v815
        %v817 = vpop.f32.mrf.mxu0
        %v818 = vadd.f32 %v697, %v817
        %v819 = vand.u32 %v280, 4294901760
        %v820 = vsub.f32 %v280, %v819
        %v821 = vand.u32 %v820, 4294901760
        %822 = vmatmul.f32.gmra.mxu0 %v821
        %v823 = vpop.f32.mrf.mxu0
        %v824 = vadd.f32 %v702, %v823
        %v825 = vand.u32 %v281, 4294901760
        %v826 = vsub.f32 %v281, %v825
        %v827 = vand.u32 %v826, 4294901760
        %828 = vmatmul.f32.gmra.mxu0 %v827
        %v829 = vpop.f32.mrf.mxu0
        %v830 = vadd.f32 %v707, %v829
        %v831 = vand.u32 %v282, 4294901760
        %v832 = vsub.f32 %v282, %v831
        %v833 = vand.u32 %v832, 4294901760
        %834 = vmatmul.f32.gmra.mxu0 %v833
        %v835 = vpop.f32.mrf.mxu0
        %v836 = vadd.f32 %v712, %v835
        %v837 = vand.u32 %v283, 4294901760
        %v838 = vsub.f32 %v283, %v837
        %v839 = vand.u32 %v838, 4294901760
        %840 = vmatmul.f32.gmra.mxu0 %v839
        %v841 = vpop.f32.mrf.mxu0
        %v842 = vadd.f32 %v717, %v841
        %v843 = vand.u32 %v284, 4294901760
        %v844 = vsub.f32 %v284, %v843
        %v845 = vand.u32 %v844, 4294901760
        %846 = vmatmul.f32.gmra.mxu0 %v845
        %v847 = vpop.f32.mrf.mxu0
        %v848 = vadd.f32 %v722, %v847
        %v849 = vand.u32 %v285, 4294901760
        %v850 = vsub.f32 %v285, %v849
        %v851 = vand.u32 %v850, 4294901760
        %852 = vmatmul.f32.gmra.mxu0 %v851
        %v853 = vpop.f32.mrf.mxu0
        %v854 = vadd.f32 %v727, %v853
        %v855 = vand.u32 %v286, 4294901760
        %v856 = vsub.f32 %v286, %v855
        %v857 = vand.u32 %v856, 4294901760
        %858 = vmatmul.f32.gmra.mxu0 %v857
        %v859 = vpop.f32.mrf.mxu0
        %v860 = vadd.f32 %v732, %v859
        %v861 = vand.u32 %v287, 4294901760
        %v862 = vsub.f32 %v287, %v861
        %v863 = vand.u32 %v862, 4294901760
        %864 = vmatmul.f32.gmra.mxu0 %v863
        %v865 = vpop.f32.mrf.mxu0
        %v866 = vadd.f32 %v737, %v865
        %867 = vdwg.mxu0
        %v868 = vand.u32 %v255, 4294901760
        %v869 = vsub.f32 %v255, %v868
        %v870 = vand.u32 %v869, 4294901760
        %871 = vmatpush.msra.mxu0 %v870
        %v872 = vand.u32 %v254, 4294901760
        %v873 = vsub.f32 %v254, %v872
        %v874 = vand.u32 %v873, 4294901760
        %875 = vmatpush.msra.mxu0 %v874
        %v876 = vand.u32 %v253, 4294901760
        %v877 = vsub.f32 %v253, %v876
        %v878 = vand.u32 %v877, 4294901760
        %879 = vmatpush.msra.mxu0 %v878
        %v880 = vand.u32 %v252, 4294901760
        %v881 = vsub.f32 %v252, %v880
        %v882 = vand.u32 %v881, 4294901760
        %883 = vmatpush.msra.mxu0 %v882
        %v884 = vand.u32 %v251, 4294901760
        %v885 = vsub.f32 %v251, %v884
        %v886 = vand.u32 %v885, 4294901760
        %887 = vmatpush.msra.mxu0 %v886
        %v888 = vand.u32 %v250, 4294901760
        %v889 = vsub.f32 %v250, %v888
        %v890 = vand.u32 %v889, 4294901760
        %891 = vmatpush.msra.mxu0 %v890
        %v892 = vand.u32 %v249, 4294901760
        %v893 = vsub.f32 %v249, %v892
        %v894 = vand.u32 %v893, 4294901760
        %895 = vmatpush.msra.mxu0 %v894
        %v896 = vand.u32 %v248, 4294901760
        %v897 = vsub.f32 %v248, %v896
        %v898 = vand.u32 %v897, 4294901760
        %899 = vmatpush.msra.mxu0 %v898
        %v900 = vand.u32 %v247, 4294901760
        %v901 = vsub.f32 %v247, %v900
        %v902 = vand.u32 %v901, 4294901760
        %903 = vmatpush.msra.mxu0 %v902
        %v904 = vand.u32 %v246, 4294901760
        %v905 = vsub.f32 %v246, %v904
        %v906 = vand.u32 %v905, 4294901760
        %907 = vmatpush.msra.mxu0 %v906
        %v908 = vand.u32 %v245, 4294901760
        %v909 = vsub.f32 %v245, %v908
        %v910 = vand.u32 %v909, 4294901760
        %911 = vmatpush.msra.mxu0 %v910
        %v912 = vand.u32 %v244, 4294901760
        %v913 = vsub.f32 %v244, %v912
        %v914 = vand.u32 %v913, 4294901760
        %915 = vmatpush.msra.mxu0 %v914
        %v916 = vand.u32 %v243, 4294901760
        %v917 = vsub.f32 %v243, %v916
        %v918 = vand.u32 %v917, 4294901760
        %919 = vmatpush.msra.mxu0 %v918
        %v920 = vand.u32 %v242, 4294901760
        %v921 = vsub.f32 %v242, %v920
        %v922 = vand.u32 %v921, 4294901760
        %923 = vmatpush.msra.mxu0 %v922
        %v924 = vand.u32 %v241, 4294901760
        %v925 = vsub.f32 %v241, %v924
        %v926 = vand.u32 %v925, 4294901760
        %927 = vmatpush.msra.mxu0 %v926
        %v928 = vand.u32 %v240, 4294901760
        %v929 = vsub.f32 %v240, %v928
        %v930 = vand.u32 %v929, 4294901760
        %931 = vmatpush.msra.mxu0 %v930
        %v932 = vand.u32 %v272, 4294901760
        %933 = vmatmul.f32.gmra.mxu0 %v932
        %v934 = vpop.f32.mrf.mxu0
        %v935 = vadd.f32 %v776, %v934
        %v936 = vand.u32 %v273, 4294901760
        %937 = vmatmul.f32.gmra.mxu0 %v936
        %v938 = vpop.f32.mrf.mxu0
        %v939 = vadd.f32 %v782, %v938
        %v940 = vand.u32 %v274, 4294901760
        %941 = vmatmul.f32.gmra.mxu0 %v940
        %v942 = vpop.f32.mrf.mxu0
        %v943 = vadd.f32 %v788, %v942
        %v944 = vand.u32 %v275, 4294901760
        %945 = vmatmul.f32.gmra.mxu0 %v944
        %v946 = vpop.f32.mrf.mxu0
        %v947 = vadd.f32 %v794, %v946
        %v948 = vand.u32 %v276, 4294901760
        %949 = vmatmul.f32.gmra.mxu0 %v948
        %v950 = vpop.f32.mrf.mxu0
        %v951 = vadd.f32 %v800, %v950
        %v952 = vand.u32 %v277, 4294901760
        %953 = vmatmul.f32.gmra.mxu0 %v952
        %v954 = vpop.f32.mrf.mxu0
        %v955 = vadd.f32 %v806, %v954
        %v956 = vand.u32 %v278, 4294901760
        %957 = vmatmul.f32.gmra.mxu0 %v956
        %v958 = vpop.f32.mrf.mxu0
        %v959 = vadd.f32 %v812, %v958
        %v960 = vand.u32 %v279, 4294901760
        %961 = vmatmul.f32.gmra.mxu0 %v960
        %v962 = vpop.f32.mrf.mxu0
        %v963 = vadd.f32 %v818, %v962
        %v964 = vand.u32 %v280, 4294901760
        %965 = vmatmul.f32.gmra.mxu0 %v964
        %v966 = vpop.f32.mrf.mxu0
        %v967 = vadd.f32 %v824, %v966
        %v968 = vand.u32 %v281, 4294901760
        %969 = vmatmul.f32.gmra.mxu0 %v968
        %v970 = vpop.f32.mrf.mxu0
        %v971 = vadd.f32 %v830, %v970
        %v972 = vand.u32 %v282, 4294901760
        %973 = vmatmul.f32.gmra.mxu0 %v972
        %v974 = vpop.f32.mrf.mxu0
        %v975 = vadd.f32 %v836, %v974
        %v976 = vand.u32 %v283, 4294901760
        %977 = vmatmul.f32.gmra.mxu0 %v976
        %v978 = vpop.f32.mrf.mxu0
        %v979 = vadd.f32 %v842, %v978
        %v980 = vand.u32 %v284, 4294901760
        %981 = vmatmul.f32.gmra.mxu0 %v980
        %v982 = vpop.f32.mrf.mxu0
        %v983 = vadd.f32 %v848, %v982
        %v984 = vand.u32 %v285, 4294901760
        %985 = vmatmul.f32.gmra.mxu0 %v984
        %v986 = vpop.f32.mrf.mxu0
        %v987 = vadd.f32 %v854, %v986
        %v988 = vand.u32 %v286, 4294901760
        %989 = vmatmul.f32.gmra.mxu0 %v988
        %v990 = vpop.f32.mrf.mxu0
        %v991 = vadd.f32 %v860, %v990
        %v992 = vand.u32 %v287, 4294901760
        %993 = vmatmul.f32.gmra.mxu0 %v992
        %v994 = vpop.f32.mrf.mxu0
        %v995 = vadd.f32 %v866, %v994
        %996 = vdwg.mxu0
        %v997 = vand.u32 %v255, 4294901760
        %998 = vmatpush.msra.mxu0 %v997
        %v999 = vand.u32 %v254, 4294901760
        %1000 = vmatpush.msra.mxu0 %v999
        %v1001 = vand.u32 %v253, 4294901760
        %1002 = vmatpush.msra.mxu0 %v1001
        %v1003 = vand.u32 %v252, 4294901760
        %1004 = vmatpush.msra.mxu0 %v1003
        %v1005 = vand.u32 %v251, 4294901760
        %1006 = vmatpush.msra.mxu0 %v1005
        %v1007 = vand.u32 %v250, 4294901760
        %1008 = vmatpush.msra.mxu0 %v1007
        %v1009 = vand.u32 %v249, 4294901760
        %1010 = vmatpush.msra.mxu0 %v1009
        %v1011 = vand.u32 %v248, 4294901760
        %1012 = vmatpush.msra.mxu0 %v1011
        %v1013 = vand.u32 %v247, 4294901760
        %1014 = vmatpush.msra.mxu0 %v1013
        %v1015 = vand.u32 %v246, 4294901760
        %1016 = vmatpush.msra.mxu0 %v1015
        %v1017 = vand.u32 %v245, 4294901760
        %1018 = vmatpush.msra.mxu0 %v1017
        %v1019 = vand.u32 %v244, 4294901760
        %1020 = vmatpush.msra.mxu0 %v1019
        %v1021 = vand.u32 %v243, 4294901760
        %1022 = vmatpush.msra.mxu0 %v1021
        %v1023 = vand.u32 %v242, 4294901760
        %1024 = vmatpush.msra.mxu0 %v1023
        %v1025 = vand.u32 %v241, 4294901760
        %1026 = vmatpush.msra.mxu0 %v1025
        %v1027 = vand.u32 %v240, 4294901760
        %1028 = vmatpush.msra.mxu0 %v1027
        %v1029 = vand.u32 %v272, 4294901760
        %1030 = vmatmul.f32.gmra.mxu0 %v1029
        %v1031 = vpop.f32.mrf.mxu0
        %v1032 = vadd.f32 %v935, %v1031
        %v1033 = vand.u32 %v273, 4294901760
        %1034 = vmatmul.f32.gmra.mxu0 %v1033
        %v1035 = vpop.f32.mrf.mxu0
        %v1036 = vadd.f32 %v939, %v1035
        %v1037 = vand.u32 %v274, 4294901760
        %1038 = vmatmul.f32.gmra.mxu0 %v1037
        %v1039 = vpop.f32.mrf.mxu0
        %v1040 = vadd.f32 %v943, %v1039
        %v1041 = vand.u32 %v275, 4294901760
        %1042 = vmatmul.f32.gmra.mxu0 %v1041
        %v1043 = vpop.f32.mrf.mxu0
        %v1044 = vadd.f32 %v947, %v1043
        %v1045 = vand.u32 %v276, 4294901760
        %1046 = vmatmul.f32.gmra.mxu0 %v1045
        %v1047 = vpop.f32.mrf.mxu0
        %v1048 = vadd.f32 %v951, %v1047
        %v1049 = vand.u32 %v277, 4294901760
        %1050 = vmatmul.f32.gmra.mxu0 %v1049
        %v1051 = vpop.f32.mrf.mxu0
        %v1052 = vadd.f32 %v955, %v1051
        %v1053 = vand.u32 %v278, 4294901760
        %1054 = vmatmul.f32.gmra.mxu0 %v1053
        %v1055 = vpop.f32.mrf.mxu0
        %v1056 = vadd.f32 %v959, %v1055
        %v1057 = vand.u32 %v279, 4294901760
        %1058 = vmatmul.f32.gmra.mxu0 %v1057
        %v1059 = vpop.f32.mrf.mxu0
        %v1060 = vadd.f32 %v963, %v1059
        %v1061 = vand.u32 %v280, 4294901760
        %1062 = vmatmul.f32.gmra.mxu0 %v1061
        %v1063 = vpop.f32.mrf.mxu0
        %v1064 = vadd.f32 %v967, %v1063
        %v1065 = vand.u32 %v281, 4294901760
        %1066 = vmatmul.f32.gmra.mxu0 %v1065
        %v1067 = vpop.f32.mrf.mxu0
        %v1068 = vadd.f32 %v971, %v1067
        %v1069 = vand.u32 %v282, 4294901760
        %1070 = vmatmul.f32.gmra.mxu0 %v1069
        %v1071 = vpop.f32.mrf.mxu0
        %v1072 = vadd.f32 %v975, %v1071
        %v1073 = vand.u32 %v283, 4294901760
        %1074 = vmatmul.f32.gmra.mxu0 %v1073
        %v1075 = vpop.f32.mrf.mxu0
        %v1076 = vadd.f32 %v979, %v1075
        %v1077 = vand.u32 %v284, 4294901760
        %1078 = vmatmul.f32.gmra.mxu0 %v1077
        %v1079 = vpop.f32.mrf.mxu0
        %v1080 = vadd.f32 %v983, %v1079
        %v1081 = vand.u32 %v285, 4294901760
        %1082 = vmatmul.f32.gmra.mxu0 %v1081
        %v1083 = vpop.f32.mrf.mxu0
        %v1084 = vadd.f32 %v987, %v1083
        %v1085 = vand.u32 %v286, 4294901760
        %1086 = vmatmul.f32.gmra.mxu0 %v1085
        %v1087 = vpop.f32.mrf.mxu0
        %v1088 = vadd.f32 %v991, %v1087
        %v1089 = vand.u32 %v287, 4294901760
        %1090 = vmatmul.f32.gmra.mxu0 %v1089
        %v1091 = vpop.f32.mrf.mxu0
        %v1092 = vadd.f32 %v995, %v1091
        %1093 = vdwg.mxu0
        %v1094 = vand.u32 %v1092, 4294901760
        %1095 = vmatpush.msra.mxu0 %v1094
        %v1096 = vand.u32 %v1088, 4294901760
        %1097 = vmatpush.msra.mxu0 %v1096
        %v1098 = vand.u32 %v1084, 4294901760
        %1099 = vmatpush.msra.mxu0 %v1098
        %v1100 = vand.u32 %v1080, 4294901760
        %1101 = vmatpush.msra.mxu0 %v1100
        %v1102 = vand.u32 %v1076, 4294901760
        %1103 = vmatpush.msra.mxu0 %v1102
        %v1104 = vand.u32 %v1072, 4294901760
        %1105 = vmatpush.msra.mxu0 %v1104
        %v1106 = vand.u32 %v1068, 4294901760
        %1107 = vmatpush.msra.mxu0 %v1106
        %v1108 = vand.u32 %v1064, 4294901760
        %1109 = vmatpush.msra.mxu0 %v1108
        %v1110 = vand.u32 %v1060, 4294901760
        %1111 = vmatpush.msra.mxu0 %v1110
        %v1112 = vand.u32 %v1056, 4294901760
        %1113 = vmatpush.msra.mxu0 %v1112
        %v1114 = vand.u32 %v1052, 4294901760
        %1115 = vmatpush.msra.mxu0 %v1114
        %v1116 = vand.u32 %v1048, 4294901760
        %1117 = vmatpush.msra.mxu0 %v1116
        %v1118 = vand.u32 %v1044, 4294901760
        %1119 = vmatpush.msra.mxu0 %v1118
        %v1120 = vand.u32 %v1040, 4294901760
        %1121 = vmatpush.msra.mxu0 %v1120
        %v1122 = vand.u32 %v1036, 4294901760
        %1123 = vmatpush.msra.mxu0 %v1122
        %v1124 = vand.u32 %v1032, 4294901760
        %1125 = vmatpush.msra.mxu0 %v1124
        %v1126 = vand.u32 %v224, 4294901760
        %v1127 = vsub.f32 %v224, %v1126
        %v1128 = vand.u32 %v1127, 4294901760
        %v1129 = vsub.f32 %v1127, %v1128
        %v1130 = vand.u32 %v1129, 4294901760
        %1131 = vmatmul.f32.gmra.mxu0 %v1130
        %v1132 = vpop.f32.mrf.mxu0
        %v1133 = vadd.f32 0.0, %v1132
        %v1134 = vand.u32 %v225, 4294901760
        %v1135 = vsub.f32 %v225, %v1134
        %v1136 = vand.u32 %v1135, 4294901760
        %v1137 = vsub.f32 %v1135, %v1136
        %v1138 = vand.u32 %v1137, 4294901760
        %1139 = vmatmul.f32.gmra.mxu0 %v1138
        %v1140 = vpop.f32.mrf.mxu0
        %v1141 = vadd.f32 0.0, %v1140
        %v1142 = vand.u32 %v226, 4294901760
        %v1143 = vsub.f32 %v226, %v1142
        %v1144 = vand.u32 %v1143, 4294901760
        %v1145 = vsub.f32 %v1143, %v1144
        %v1146 = vand.u32 %v1145, 4294901760
        %1147 = vmatmul.f32.gmra.mxu0 %v1146
        %v1148 = vpop.f32.mrf.mxu0
        %v1149 = vadd.f32 0.0, %v1148
        %v1150 = vand.u32 %v227, 4294901760
        %v1151 = vsub.f32 %v227, %v1150
        %v1152 = vand.u32 %v1151, 4294901760
        %v1153 = vsub.f32 %v1151, %v1152
        %v1154 = vand.u32 %v1153, 4294901760
        %1155 = vmatmul.f32.gmra.mxu0 %v1154
        %v1156 = vpop.f32.mrf.mxu0
        %v1157 = vadd.f32 0.0, %v1156
        %v1158 = vand.u32 %v228, 4294901760
        %v1159 = vsub.f32 %v228, %v1158
        %v1160 = vand.u32 %v1159, 4294901760
        %v1161 = vsub.f32 %v1159, %v1160
        %v1162 = vand.u32 %v1161, 4294901760
        %1163 = vmatmul.f32.gmra.mxu0 %v1162
        %v1164 = vpop.f32.mrf.mxu0
        %v1165 = vadd.f32 0.0, %v1164
        %v1166 = vand.u32 %v229, 4294901760
        %v1167 = vsub.f32 %v229, %v1166
        %v1168 = vand.u32 %v1167, 4294901760
        %v1169 = vsub.f32 %v1167, %v1168
        %v1170 = vand.u32 %v1169, 4294901760
        %1171 = vmatmul.f32.gmra.mxu0 %v1170
        %v1172 = vpop.f32.mrf.mxu0
        %v1173 = vadd.f32 0.0, %v1172
        %v1174 = vand.u32 %v230, 4294901760
        %v1175 = vsub.f32 %v230, %v1174
        %v1176 = vand.u32 %v1175, 4294901760
        %v1177 = vsub.f32 %v1175, %v1176
        %v1178 = vand.u32 %v1177, 4294901760
        %1179 = vmatmul.f32.gmra.mxu0 %v1178
        %v1180 = vpop.f32.mrf.mxu0
        %v1181 = vadd.f32 0.0, %v1180
        %v1182 = vand.u32 %v231, 4294901760
        %v1183 = vsub.f32 %v231, %v1182
        %v1184 = vand.u32 %v1183, 4294901760
        %v1185 = vsub.f32 %v1183, %v1184
        %v1186 = vand.u32 %v1185, 4294901760
        %1187 = vmatmul.f32.gmra.mxu0 %v1186
        %v1188 = vpop.f32.mrf.mxu0
        %v1189 = vadd.f32 0.0, %v1188
        %v1190 = vand.u32 %v232, 4294901760
        %v1191 = vsub.f32 %v232, %v1190
        %v1192 = vand.u32 %v1191, 4294901760
        %v1193 = vsub.f32 %v1191, %v1192
        %v1194 = vand.u32 %v1193, 4294901760
        %1195 = vmatmul.f32.gmra.mxu0 %v1194
        %v1196 = vpop.f32.mrf.mxu0
        %v1197 = vadd.f32 0.0, %v1196
        %v1198 = vand.u32 %v233, 4294901760
        %v1199 = vsub.f32 %v233, %v1198
        %v1200 = vand.u32 %v1199, 4294901760
        %v1201 = vsub.f32 %v1199, %v1200
        %v1202 = vand.u32 %v1201, 4294901760
        %1203 = vmatmul.f32.gmra.mxu0 %v1202
        %v1204 = vpop.f32.mrf.mxu0
        %v1205 = vadd.f32 0.0, %v1204
        %v1206 = vand.u32 %v234, 4294901760
        %v1207 = vsub.f32 %v234, %v1206
        %v1208 = vand.u32 %v1207, 4294901760
        %v1209 = vsub.f32 %v1207, %v1208
        %v1210 = vand.u32 %v1209, 4294901760
        %1211 = vmatmul.f32.gmra.mxu0 %v1210
        %v1212 = vpop.f32.mrf.mxu0
        %v1213 = vadd.f32 0.0, %v1212
        %v1214 = vand.u32 %v235, 4294901760
        %v1215 = vsub.f32 %v235, %v1214
        %v1216 = vand.u32 %v1215, 4294901760
        %v1217 = vsub.f32 %v1215, %v1216
        %v1218 = vand.u32 %v1217, 4294901760
        %1219 = vmatmul.f32.gmra.mxu0 %v1218
        %v1220 = vpop.f32.mrf.mxu0
        %v1221 = vadd.f32 0.0, %v1220
        %v1222 = vand.u32 %v236, 4294901760
        %v1223 = vsub.f32 %v236, %v1222
        %v1224 = vand.u32 %v1223, 4294901760
        %v1225 = vsub.f32 %v1223, %v1224
        %v1226 = vand.u32 %v1225, 4294901760
        %1227 = vmatmul.f32.gmra.mxu0 %v1226
        %v1228 = vpop.f32.mrf.mxu0
        %v1229 = vadd.f32 0.0, %v1228
        %v1230 = vand.u32 %v237, 4294901760
        %v1231 = vsub.f32 %v237, %v1230
        %v1232 = vand.u32 %v1231, 4294901760
        %v1233 = vsub.f32 %v1231, %v1232
        %v1234 = vand.u32 %v1233, 4294901760
        %1235 = vmatmul.f32.gmra.mxu0 %v1234
        %v1236 = vpop.f32.mrf.mxu0
        %v1237 = vadd.f32 0.0, %v1236
        %v1238 = vand.u32 %v238, 4294901760
        %v1239 = vsub.f32 %v238, %v1238
        %v1240 = vand.u32 %v1239, 4294901760
        %v1241 = vsub.f32 %v1239, %v1240
        %v1242 = vand.u32 %v1241, 4294901760
        %1243 = vmatmul.f32.gmra.mxu0 %v1242
        %v1244 = vpop.f32.mrf.mxu0
        %v1245 = vadd.f32 0.0, %v1244
        %v1246 = vand.u32 %v239, 4294901760
        %v1247 = vsub.f32 %v239, %v1246
        %v1248 = vand.u32 %v1247, 4294901760
        %v1249 = vsub.f32 %v1247, %v1248
        %v1250 = vand.u32 %v1249, 4294901760
        %1251 = vmatmul.f32.gmra.mxu0 %v1250
        %v1252 = vpop.f32.mrf.mxu0
        %v1253 = vadd.f32 0.0, %v1252
        %1254 = vdwg.mxu0
        %v1255 = vand.u32 %v1092, 4294901760
        %v1256 = vsub.f32 %v1092, %v1255
        %v1257 = vand.u32 %v1256, 4294901760
        %v1258 = vsub.f32 %v1256, %v1257
        %v1259 = vand.u32 %v1258, 4294901760
        %1260 = vmatpush.msra.mxu0 %v1259
        %v1261 = vand.u32 %v1088, 4294901760
        %v1262 = vsub.f32 %v1088, %v1261
        %v1263 = vand.u32 %v1262, 4294901760
        %v1264 = vsub.f32 %v1262, %v1263
        %v1265 = vand.u32 %v1264, 4294901760
        %1266 = vmatpush.msra.mxu0 %v1265
        %v1267 = vand.u32 %v1084, 4294901760
        %v1268 = vsub.f32 %v1084, %v1267
        %v1269 = vand.u32 %v1268, 4294901760
        %v1270 = vsub.f32 %v1268, %v1269
        %v1271 = vand.u32 %v1270, 4294901760
        %1272 = vmatpush.msra.mxu0 %v1271
        %v1273 = vand.u32 %v1080, 4294901760
        %v1274 = vsub.f32 %v1080, %v1273
        %v1275 = vand.u32 %v1274, 4294901760
        %v1276 = vsub.f32 %v1274, %v1275
        %v1277 = vand.u32 %v1276, 4294901760
        %1278 = vmatpush.msra.mxu0 %v1277
        %v1279 = vand.u32 %v1076, 4294901760
        %v1280 = vsub.f32 %v1076, %v1279
        %v1281 = vand.u32 %v1280, 4294901760
        %v1282 = vsub.f32 %v1280, %v1281
        %v1283 = vand.u32 %v1282, 4294901760
        %1284 = vmatpush.msra.mxu0 %v1283
        %v1285 = vand.u32 %v1072, 4294901760
        %v1286 = vsub.f32 %v1072, %v1285
        %v1287 = vand.u32 %v1286, 4294901760
        %v1288 = vsub.f32 %v1286, %v1287
        %v1289 = vand.u32 %v1288, 4294901760
        %1290 = vmatpush.msra.mxu0 %v1289
        %v1291 = vand.u32 %v1068, 4294901760
        %v1292 = vsub.f32 %v1068, %v1291
        %v1293 = vand.u32 %v1292, 4294901760
        %v1294 = vsub.f32 %v1292, %v1293
        %v1295 = vand.u32 %v1294, 4294901760
        %1296 = vmatpush.msra.mxu0 %v1295
        %v1297 = vand.u32 %v1064, 4294901760
        %v1298 = vsub.f32 %v1064, %v1297
        %v1299 = vand.u32 %v1298, 4294901760
        %v1300 = vsub.f32 %v1298, %v1299
        %v1301 = vand.u32 %v1300, 4294901760
        %1302 = vmatpush.msra.mxu0 %v1301
        %v1303 = vand.u32 %v1060, 4294901760
        %v1304 = vsub.f32 %v1060, %v1303
        %v1305 = vand.u32 %v1304, 4294901760
        %v1306 = vsub.f32 %v1304, %v1305
        %v1307 = vand.u32 %v1306, 4294901760
        %1308 = vmatpush.msra.mxu0 %v1307
        %v1309 = vand.u32 %v1056, 4294901760
        %v1310 = vsub.f32 %v1056, %v1309
        %v1311 = vand.u32 %v1310, 4294901760
        %v1312 = vsub.f32 %v1310, %v1311
        %v1313 = vand.u32 %v1312, 4294901760
        %1314 = vmatpush.msra.mxu0 %v1313
        %v1315 = vand.u32 %v1052, 4294901760
        %v1316 = vsub.f32 %v1052, %v1315
        %v1317 = vand.u32 %v1316, 4294901760
        %v1318 = vsub.f32 %v1316, %v1317
        %v1319 = vand.u32 %v1318, 4294901760
        %1320 = vmatpush.msra.mxu0 %v1319
        %v1321 = vand.u32 %v1048, 4294901760
        %v1322 = vsub.f32 %v1048, %v1321
        %v1323 = vand.u32 %v1322, 4294901760
        %v1324 = vsub.f32 %v1322, %v1323
        %v1325 = vand.u32 %v1324, 4294901760
        %1326 = vmatpush.msra.mxu0 %v1325
        %v1327 = vand.u32 %v1044, 4294901760
        %v1328 = vsub.f32 %v1044, %v1327
        %v1329 = vand.u32 %v1328, 4294901760
        %v1330 = vsub.f32 %v1328, %v1329
        %v1331 = vand.u32 %v1330, 4294901760
        %1332 = vmatpush.msra.mxu0 %v1331
        %v1333 = vand.u32 %v1040, 4294901760
        %v1334 = vsub.f32 %v1040, %v1333
        %v1335 = vand.u32 %v1334, 4294901760
        %v1336 = vsub.f32 %v1334, %v1335
        %v1337 = vand.u32 %v1336, 4294901760
        %1338 = vmatpush.msra.mxu0 %v1337
        %v1339 = vand.u32 %v1036, 4294901760
        %v1340 = vsub.f32 %v1036, %v1339
        %v1341 = vand.u32 %v1340, 4294901760
        %v1342 = vsub.f32 %v1340, %v1341
        %v1343 = vand.u32 %v1342, 4294901760
        %1344 = vmatpush.msra.mxu0 %v1343
        %v1345 = vand.u32 %v1032, 4294901760
        %v1346 = vsub.f32 %v1032, %v1345
        %v1347 = vand.u32 %v1346, 4294901760
        %v1348 = vsub.f32 %v1346, %v1347
        %v1349 = vand.u32 %v1348, 4294901760
        %1350 = vmatpush.msra.mxu0 %v1349
        %v1351 = vand.u32 %v224, 4294901760
        %1352 = vmatmul.f32.gmra.mxu0 %v1351
        %v1353 = vpop.f32.mrf.mxu0
        %v1354 = vadd.f32 %v1133, %v1353
        %v1355 = vand.u32 %v225, 4294901760
        %1356 = vmatmul.f32.gmra.mxu0 %v1355
        %v1357 = vpop.f32.mrf.mxu0
        %v1358 = vadd.f32 %v1141, %v1357
        %v1359 = vand.u32 %v226, 4294901760
        %1360 = vmatmul.f32.gmra.mxu0 %v1359
        %v1361 = vpop.f32.mrf.mxu0
        %v1362 = vadd.f32 %v1149, %v1361
        %v1363 = vand.u32 %v227, 4294901760
        %1364 = vmatmul.f32.gmra.mxu0 %v1363
        %v1365 = vpop.f32.mrf.mxu0
        %v1366 = vadd.f32 %v1157, %v1365
        %v1367 = vand.u32 %v228, 4294901760
        %1368 = vmatmul.f32.gmra.mxu0 %v1367
        %v1369 = vpop.f32.mrf.mxu0
        %v1370 = vadd.f32 %v1165, %v1369
        %v1371 = vand.u32 %v229, 4294901760
        %1372 = vmatmul.f32.gmra.mxu0 %v1371
        %v1373 = vpop.f32.mrf.mxu0
        %v1374 = vadd.f32 %v1173, %v1373
        %v1375 = vand.u32 %v230, 4294901760
        %1376 = vmatmul.f32.gmra.mxu0 %v1375
        %v1377 = vpop.f32.mrf.mxu0
        %v1378 = vadd.f32 %v1181, %v1377
        %v1379 = vand.u32 %v231, 4294901760
        %1380 = vmatmul.f32.gmra.mxu0 %v1379
        %v1381 = vpop.f32.mrf.mxu0
        %v1382 = vadd.f32 %v1189, %v1381
        %v1383 = vand.u32 %v232, 4294901760
        %1384 = vmatmul.f32.gmra.mxu0 %v1383
        %v1385 = vpop.f32.mrf.mxu0
        %v1386 = vadd.f32 %v1197, %v1385
        %v1387 = vand.u32 %v233, 4294901760
        %1388 = vmatmul.f32.gmra.mxu0 %v1387
        %v1389 = vpop.f32.mrf.mxu0
        %v1390 = vadd.f32 %v1205, %v1389
        %v1391 = vand.u32 %v234, 4294901760
        %1392 = vmatmul.f32.gmra.mxu0 %v1391
        %v1393 = vpop.f32.mrf.mxu0
        %v1394 = vadd.f32 %v1213, %v1393
        %v1395 = vand.u32 %v235, 4294901760
        %1396 = vmatmul.f32.gmra.mxu0 %v1395
        %v1397 = vpop.f32.mrf.mxu0
        %v1398 = vadd.f32 %v1221, %v1397
        %v1399 = vand.u32 %v236, 4294901760
        %1400 = vmatmul.f32.gmra.mxu0 %v1399
        %v1401 = vpop.f32.mrf.mxu0
        %v1402 = vadd.f32 %v1229, %v1401
        %v1403 = vand.u32 %v237, 4294901760
        %1404 = vmatmul.f32.gmra.mxu0 %v1403
        %v1405 = vpop.f32.mrf.mxu0
        %v1406 = vadd.f32 %v1237, %v1405
        %v1407 = vand.u32 %v238, 4294901760
        %1408 = vmatmul.f32.gmra.mxu0 %v1407
        %v1409 = vpop.f32.mrf.mxu0
        %v1410 = vadd.f32 %v1245, %v1409
        %v1411 = vand.u32 %v239, 4294901760
        %1412 = vmatmul.f32.gmra.mxu0 %v1411
        %v1413 = vpop.f32.mrf.mxu0
        %v1414 = vadd.f32 %v1253, %v1413
        %1415 = vdwg.mxu0
        %v1416 = vand.u32 %v1092, 4294901760
        %v1417 = vsub.f32 %v1092, %v1416
        %1418 = vmatpush.msra.mxu0 %v1417
        %v1419 = vand.u32 %v1088, 4294901760
        %v1420 = vsub.f32 %v1088, %v1419
        %1421 = vmatpush.msra.mxu0 %v1420
        %v1422 = vand.u32 %v1084, 4294901760
        %v1423 = vsub.f32 %v1084, %v1422
        %1424 = vmatpush.msra.mxu0 %v1423
        %v1425 = vand.u32 %v1080, 4294901760
        %v1426 = vsub.f32 %v1080, %v1425
        %1427 = vmatpush.msra.mxu0 %v1426
        %v1428 = vand.u32 %v1076, 4294901760
        %v1429 = vsub.f32 %v1076, %v1428
        %1430 = vmatpush.msra.mxu0 %v1429
        %v1431 = vand.u32 %v1072, 4294901760
        %v1432 = vsub.f32 %v1072, %v1431
        %1433 = vmatpush.msra.mxu0 %v1432
        %v1434 = vand.u32 %v1068, 4294901760
        %v1435 = vsub.f32 %v1068, %v1434
        %1436 = vmatpush.msra.mxu0 %v1435
        %v1437 = vand.u32 %v1064, 4294901760
        %v1438 = vsub.f32 %v1064, %v1437
        %1439 = vmatpush.msra.mxu0 %v1438
        %v1440 = vand.u32 %v1060, 4294901760
        %v1441 = vsub.f32 %v1060, %v1440
        %1442 = vmatpush.msra.mxu0 %v1441
        %v1443 = vand.u32 %v1056, 4294901760
        %v1444 = vsub.f32 %v1056, %v1443
        %1445 = vmatpush.msra.mxu0 %v1444
        %v1446 = vand.u32 %v1052, 4294901760
        %v1447 = vsub.f32 %v1052, %v1446
        %1448 = vmatpush.msra.mxu0 %v1447
        %v1449 = vand.u32 %v1048, 4294901760
        %v1450 = vsub.f32 %v1048, %v1449
        %1451 = vmatpush.msra.mxu0 %v1450
        %v1452 = vand.u32 %v1044, 4294901760
        %v1453 = vsub.f32 %v1044, %v1452
        %1454 = vmatpush.msra.mxu0 %v1453
        %v1455 = vand.u32 %v1040, 4294901760
        %v1456 = vsub.f32 %v1040, %v1455
        %1457 = vmatpush.msra.mxu0 %v1456
        %v1458 = vand.u32 %v1036, 4294901760
        %v1459 = vsub.f32 %v1036, %v1458
        %1460 = vmatpush.msra.mxu0 %v1459
        %v1461 = vand.u32 %v1032, 4294901760
        %v1462 = vsub.f32 %v1032, %v1461
        %1463 = vmatpush.msra.mxu0 %v1462
        %v1464 = vand.u32 %v224, 4294901760
        %v1465 = vsub.f32 %v224, %v1464
        %1466 = vmatmul.f32.gmra.mxu0 %v1465
        %v1467 = vpop.f32.mrf.mxu0
        %v1468 = vadd.f32 %v1354, %v1467
        %v1469 = vand.u32 %v225, 4294901760
        %v1470 = vsub.f32 %v225, %v1469
        %1471 = vmatmul.f32.gmra.mxu0 %v1470
        %v1472 = vpop.f32.mrf.mxu0
        %v1473 = vadd.f32 %v1358, %v1472
        %v1474 = vand.u32 %v226, 4294901760
        %v1475 = vsub.f32 %v226, %v1474
        %1476 = vmatmul.f32.gmra.mxu0 %v1475
        %v1477 = vpop.f32.mrf.mxu0
        %v1478 = vadd.f32 %v1362, %v1477
        %v1479 = vand.u32 %v227, 4294901760
        %v1480 = vsub.f32 %v227, %v1479
        %1481 = vmatmul.f32.gmra.mxu0 %v1480
        %v1482 = vpop.f32.mrf.mxu0
        %v1483 = vadd.f32 %v1366, %v1482
        %v1484 = vand.u32 %v228, 4294901760
        %v1485 = vsub.f32 %v228, %v1484
        %1486 = vmatmul.f32.gmra.mxu0 %v1485
        %v1487 = vpop.f32.mrf.mxu0
        %v1488 = vadd.f32 %v1370, %v1487
        %v1489 = vand.u32 %v229, 4294901760
        %v1490 = vsub.f32 %v229, %v1489
        %1491 = vmatmul.f32.gmra.mxu0 %v1490
        %v1492 = vpop.f32.mrf.mxu0
        %v1493 = vadd.f32 %v1374, %v1492
        %v1494 = vand.u32 %v230, 4294901760
        %v1495 = vsub.f32 %v230, %v1494
        %1496 = vmatmul.f32.gmra.mxu0 %v1495
        %v1497 = vpop.f32.mrf.mxu0
        %v1498 = vadd.f32 %v1378, %v1497
        %v1499 = vand.u32 %v231, 4294901760
        %v1500 = vsub.f32 %v231, %v1499
        %1501 = vmatmul.f32.gmra.mxu0 %v1500
        %v1502 = vpop.f32.mrf.mxu0
        %v1503 = vadd.f32 %v1382, %v1502
        %v1504 = vand.u32 %v232, 4294901760
        %v1505 = vsub.f32 %v232, %v1504
        %1506 = vmatmul.f32.gmra.mxu0 %v1505
        %v1507 = vpop.f32.mrf.mxu0
        %v1508 = vadd.f32 %v1386, %v1507
        %v1509 = vand.u32 %v233, 4294901760
        %v1510 = vsub.f32 %v233, %v1509
        %1511 = vmatmul.f32.gmra.mxu0 %v1510
        %v1512 = vpop.f32.mrf.mxu0
        %v1513 = vadd.f32 %v1390, %v1512
        %v1514 = vand.u32 %v234, 4294901760
        %v1515 = vsub.f32 %v234, %v1514
        %1516 = vmatmul.f32.gmra.mxu0 %v1515
        %v1517 = vpop.f32.mrf.mxu0
        %v1518 = vadd.f32 %v1394, %v1517
        %v1519 = vand.u32 %v235, 4294901760
        %v1520 = vsub.f32 %v235, %v1519
        %1521 = vmatmul.f32.gmra.mxu0 %v1520
        %v1522 = vpop.f32.mrf.mxu0
        %v1523 = vadd.f32 %v1398, %v1522
        %v1524 = vand.u32 %v236, 4294901760
        %v1525 = vsub.f32 %v236, %v1524
        %1526 = vmatmul.f32.gmra.mxu0 %v1525
        %v1527 = vpop.f32.mrf.mxu0
        %v1528 = vadd.f32 %v1402, %v1527
        %v1529 = vand.u32 %v237, 4294901760
        %v1530 = vsub.f32 %v237, %v1529
        %1531 = vmatmul.f32.gmra.mxu0 %v1530
        %v1532 = vpop.f32.mrf.mxu0
        %v1533 = vadd.f32 %v1406, %v1532
        %v1534 = vand.u32 %v238, 4294901760
        %v1535 = vsub.f32 %v238, %v1534
        %1536 = vmatmul.f32.gmra.mxu0 %v1535
        %v1537 = vpop.f32.mrf.mxu0
        %v1538 = vadd.f32 %v1410, %v1537
        %v1539 = vand.u32 %v239, 4294901760
        %v1540 = vsub.f32 %v239, %v1539
        %1541 = vmatmul.f32.gmra.mxu0 %v1540
        %v1542 = vpop.f32.mrf.mxu0
        %v1543 = vadd.f32 %v1414, %v1542
        %1544 = vdwg.mxu0
        %v1545 = vand.u32 %v1092, 4294901760
        %1546 = vmatpush.msra.mxu0 %v1545
        %v1547 = vand.u32 %v1088, 4294901760
        %1548 = vmatpush.msra.mxu0 %v1547
        %v1549 = vand.u32 %v1084, 4294901760
        %1550 = vmatpush.msra.mxu0 %v1549
        %v1551 = vand.u32 %v1080, 4294901760
        %1552 = vmatpush.msra.mxu0 %v1551
        %v1553 = vand.u32 %v1076, 4294901760
        %1554 = vmatpush.msra.mxu0 %v1553
        %v1555 = vand.u32 %v1072, 4294901760
        %1556 = vmatpush.msra.mxu0 %v1555
        %v1557 = vand.u32 %v1068, 4294901760
        %1558 = vmatpush.msra.mxu0 %v1557
        %v1559 = vand.u32 %v1064, 4294901760
        %1560 = vmatpush.msra.mxu0 %v1559
        %v1561 = vand.u32 %v1060, 4294901760
        %1562 = vmatpush.msra.mxu0 %v1561
        %v1563 = vand.u32 %v1056, 4294901760
        %1564 = vmatpush.msra.mxu0 %v1563
        %v1565 = vand.u32 %v1052, 4294901760
        %1566 = vmatpush.msra.mxu0 %v1565
        %v1567 = vand.u32 %v1048, 4294901760
        %1568 = vmatpush.msra.mxu0 %v1567
        %v1569 = vand.u32 %v1044, 4294901760
        %1570 = vmatpush.msra.mxu0 %v1569
        %v1571 = vand.u32 %v1040, 4294901760
        %1572 = vmatpush.msra.mxu0 %v1571
        %v1573 = vand.u32 %v1036, 4294901760
        %1574 = vmatpush.msra.mxu0 %v1573
        %v1575 = vand.u32 %v1032, 4294901760
        %1576 = vmatpush.msra.mxu0 %v1575
        %v1577 = vand.u32 %v224, 4294901760
        %v1578 = vsub.f32 %v224, %v1577
        %v1579 = vand.u32 %v1578, 4294901760
        %1580 = vmatmul.f32.gmra.mxu0 %v1579
        %v1581 = vpop.f32.mrf.mxu0
        %v1582 = vadd.f32 %v1468, %v1581
        %v1583 = vand.u32 %v225, 4294901760
        %v1584 = vsub.f32 %v225, %v1583
        %v1585 = vand.u32 %v1584, 4294901760
        %1586 = vmatmul.f32.gmra.mxu0 %v1585
        %v1587 = vpop.f32.mrf.mxu0
        %v1588 = vadd.f32 %v1473, %v1587
        %v1589 = vand.u32 %v226, 4294901760
        %v1590 = vsub.f32 %v226, %v1589
        %v1591 = vand.u32 %v1590, 4294901760
        %1592 = vmatmul.f32.gmra.mxu0 %v1591
        %v1593 = vpop.f32.mrf.mxu0
        %v1594 = vadd.f32 %v1478, %v1593
        %v1595 = vand.u32 %v227, 4294901760
        %v1596 = vsub.f32 %v227, %v1595
        %v1597 = vand.u32 %v1596, 4294901760
        %1598 = vmatmul.f32.gmra.mxu0 %v1597
        %v1599 = vpop.f32.mrf.mxu0
        %v1600 = vadd.f32 %v1483, %v1599
        %v1601 = vand.u32 %v228, 4294901760
        %v1602 = vsub.f32 %v228, %v1601
        %v1603 = vand.u32 %v1602, 4294901760
        %1604 = vmatmul.f32.gmra.mxu0 %v1603
        %v1605 = vpop.f32.mrf.mxu0
        %v1606 = vadd.f32 %v1488, %v1605
        %v1607 = vand.u32 %v229, 4294901760
        %v1608 = vsub.f32 %v229, %v1607
        %v1609 = vand.u32 %v1608, 4294901760
        %1610 = vmatmul.f32.gmra.mxu0 %v1609
        %v1611 = vpop.f32.mrf.mxu0
        %v1612 = vadd.f32 %v1493, %v1611
        %v1613 = vand.u32 %v230, 4294901760
        %v1614 = vsub.f32 %v230, %v1613
        %v1615 = vand.u32 %v1614, 4294901760
        %1616 = vmatmul.f32.gmra.mxu0 %v1615
        %v1617 = vpop.f32.mrf.mxu0
        %v1618 = vadd.f32 %v1498, %v1617
        %v1619 = vand.u32 %v231, 4294901760
        %v1620 = vsub.f32 %v231, %v1619
        %v1621 = vand.u32 %v1620, 4294901760
        %1622 = vmatmul.f32.gmra.mxu0 %v1621
        %v1623 = vpop.f32.mrf.mxu0
        %v1624 = vadd.f32 %v1503, %v1623
        %v1625 = vand.u32 %v232, 4294901760
        %v1626 = vsub.f32 %v232, %v1625
        %v1627 = vand.u32 %v1626, 4294901760
        %1628 = vmatmul.f32.gmra.mxu0 %v1627
        %v1629 = vpop.f32.mrf.mxu0
        %v1630 = vadd.f32 %v1508, %v1629
        %v1631 = vand.u32 %v233, 4294901760
        %v1632 = vsub.f32 %v233, %v1631
        %v1633 = vand.u32 %v1632, 4294901760
        %1634 = vmatmul.f32.gmra.mxu0 %v1633
        %v1635 = vpop.f32.mrf.mxu0
        %v1636 = vadd.f32 %v1513, %v1635
        %v1637 = vand.u32 %v234, 4294901760
        %v1638 = vsub.f32 %v234, %v1637
        %v1639 = vand.u32 %v1638, 4294901760
        %1640 = vmatmul.f32.gmra.mxu0 %v1639
        %v1641 = vpop.f32.mrf.mxu0
        %v1642 = vadd.f32 %v1518, %v1641
        %v1643 = vand.u32 %v235, 4294901760
        %v1644 = vsub.f32 %v235, %v1643
        %v1645 = vand.u32 %v1644, 4294901760
        %1646 = vmatmul.f32.gmra.mxu0 %v1645
        %v1647 = vpop.f32.mrf.mxu0
        %v1648 = vadd.f32 %v1523, %v1647
        %v1649 = vand.u32 %v236, 4294901760
        %v1650 = vsub.f32 %v236, %v1649
        %v1651 = vand.u32 %v1650, 4294901760
        %1652 = vmatmul.f32.gmra.mxu0 %v1651
        %v1653 = vpop.f32.mrf.mxu0
        %v1654 = vadd.f32 %v1528, %v1653
        %v1655 = vand.u32 %v237, 4294901760
        %v1656 = vsub.f32 %v237, %v1655
        %v1657 = vand.u32 %v1656, 4294901760
        %1658 = vmatmul.f32.gmra.mxu0 %v1657
        %v1659 = vpop.f32.mrf.mxu0
        %v1660 = vadd.f32 %v1533, %v1659
        %v1661 = vand.u32 %v238, 4294901760
        %v1662 = vsub.f32 %v238, %v1661
        %v1663 = vand.u32 %v1662, 4294901760
        %1664 = vmatmul.f32.gmra.mxu0 %v1663
        %v1665 = vpop.f32.mrf.mxu0
        %v1666 = vadd.f32 %v1538, %v1665
        %v1667 = vand.u32 %v239, 4294901760
        %v1668 = vsub.f32 %v239, %v1667
        %v1669 = vand.u32 %v1668, 4294901760
        %1670 = vmatmul.f32.gmra.mxu0 %v1669
        %v1671 = vpop.f32.mrf.mxu0
        %v1672 = vadd.f32 %v1543, %v1671
        %1673 = vdwg.mxu0
        %v1674 = vand.u32 %v1092, 4294901760
        %v1675 = vsub.f32 %v1092, %v1674
        %v1676 = vand.u32 %v1675, 4294901760
        %1677 = vmatpush.msra.mxu0 %v1676
        %v1678 = vand.u32 %v1088, 4294901760
        %v1679 = vsub.f32 %v1088, %v1678
        %v1680 = vand.u32 %v1679, 4294901760
        %1681 = vmatpush.msra.mxu0 %v1680
        %v1682 = vand.u32 %v1084, 4294901760
        %v1683 = vsub.f32 %v1084, %v1682
        %v1684 = vand.u32 %v1683, 4294901760
        %1685 = vmatpush.msra.mxu0 %v1684
        %v1686 = vand.u32 %v1080, 4294901760
        %v1687 = vsub.f32 %v1080, %v1686
        %v1688 = vand.u32 %v1687, 4294901760
        %1689 = vmatpush.msra.mxu0 %v1688
        %v1690 = vand.u32 %v1076, 4294901760
        %v1691 = vsub.f32 %v1076, %v1690
        %v1692 = vand.u32 %v1691, 4294901760
        %1693 = vmatpush.msra.mxu0 %v1692
        %v1694 = vand.u32 %v1072, 4294901760
        %v1695 = vsub.f32 %v1072, %v1694
        %v1696 = vand.u32 %v1695, 4294901760
        %1697 = vmatpush.msra.mxu0 %v1696
        %v1698 = vand.u32 %v1068, 4294901760
        %v1699 = vsub.f32 %v1068, %v1698
        %v1700 = vand.u32 %v1699, 4294901760
        %1701 = vmatpush.msra.mxu0 %v1700
        %v1702 = vand.u32 %v1064, 4294901760
        %v1703 = vsub.f32 %v1064, %v1702
        %v1704 = vand.u32 %v1703, 4294901760
        %1705 = vmatpush.msra.mxu0 %v1704
        %v1706 = vand.u32 %v1060, 4294901760
        %v1707 = vsub.f32 %v1060, %v1706
        %v1708 = vand.u32 %v1707, 4294901760
        %1709 = vmatpush.msra.mxu0 %v1708
        %v1710 = vand.u32 %v1056, 4294901760
        %v1711 = vsub.f32 %v1056, %v1710
        %v1712 = vand.u32 %v1711, 4294901760
        %1713 = vmatpush.msra.mxu0 %v1712
        %v1714 = vand.u32 %v1052, 4294901760
        %v1715 = vsub.f32 %v1052, %v1714
        %v1716 = vand.u32 %v1715, 4294901760
        %1717 = vmatpush.msra.mxu0 %v1716
        %v1718 = vand.u32 %v1048, 4294901760
        %v1719 = vsub.f32 %v1048, %v1718
        %v1720 = vand.u32 %v1719, 4294901760
        %1721 = vmatpush.msra.mxu0 %v1720
        %v1722 = vand.u32 %v1044, 4294901760
        %v1723 = vsub.f32 %v1044, %v1722
        %v1724 = vand.u32 %v1723, 4294901760
        %1725 = vmatpush.msra.mxu0 %v1724
        %v1726 = vand.u32 %v1040, 4294901760
        %v1727 = vsub.f32 %v1040, %v1726
        %v1728 = vand.u32 %v1727, 4294901760
        %1729 = vmatpush.msra.mxu0 %v1728
        %v1730 = vand.u32 %v1036, 4294901760
        %v1731 = vsub.f32 %v1036, %v1730
        %v1732 = vand.u32 %v1731, 4294901760
        %1733 = vmatpush.msra.mxu0 %v1732
        %v1734 = vand.u32 %v1032, 4294901760
        %v1735 = vsub.f32 %v1032, %v1734
        %v1736 = vand.u32 %v1735, 4294901760
        %1737 = vmatpush.msra.mxu0 %v1736
        %v1738 = vand.u32 %v224, 4294901760
        %1739 = vmatmul.f32.gmra.mxu0 %v1738
        %v1740 = vpop.f32.mrf.mxu0
        %v1741 = vadd.f32 %v1582, %v1740
        %v1742 = vand.u32 %v225, 4294901760
        %1743 = vmatmul.f32.gmra.mxu0 %v1742
        %v1744 = vpop.f32.mrf.mxu0
        %v1745 = vadd.f32 %v1588, %v1744
        %v1746 = vand.u32 %v226, 4294901760
        %1747 = vmatmul.f32.gmra.mxu0 %v1746
        %v1748 = vpop.f32.mrf.mxu0
        %v1749 = vadd.f32 %v1594, %v1748
        %v1750 = vand.u32 %v227, 4294901760
        %1751 = vmatmul.f32.gmra.mxu0 %v1750
        %v1752 = vpop.f32.mrf.mxu0
        %v1753 = vadd.f32 %v1600, %v1752
        %v1754 = vand.u32 %v228, 4294901760
        %1755 = vmatmul.f32.gmra.mxu0 %v1754
        %v1756 = vpop.f32.mrf.mxu0
        %v1757 = vadd.f32 %v1606, %v1756
        %v1758 = vand.u32 %v229, 4294901760
        %1759 = vmatmul.f32.gmra.mxu0 %v1758
        %v1760 = vpop.f32.mrf.mxu0
        %v1761 = vadd.f32 %v1612, %v1760
        %v1762 = vand.u32 %v230, 4294901760
        %1763 = vmatmul.f32.gmra.mxu0 %v1762
        %v1764 = vpop.f32.mrf.mxu0
        %v1765 = vadd.f32 %v1618, %v1764
        %v1766 = vand.u32 %v231, 4294901760
        %1767 = vmatmul.f32.gmra.mxu0 %v1766
        %v1768 = vpop.f32.mrf.mxu0
        %v1769 = vadd.f32 %v1624, %v1768
        %v1770 = vand.u32 %v232, 4294901760
        %1771 = vmatmul.f32.gmra.mxu0 %v1770
        %v1772 = vpop.f32.mrf.mxu0
        %v1773 = vadd.f32 %v1630, %v1772
        %v1774 = vand.u32 %v233, 4294901760
        %1775 = vmatmul.f32.gmra.mxu0 %v1774
        %v1776 = vpop.f32.mrf.mxu0
        %v1777 = vadd.f32 %v1636, %v1776
        %v1778 = vand.u32 %v234, 4294901760
        %1779 = vmatmul.f32.gmra.mxu0 %v1778
        %v1780 = vpop.f32.mrf.mxu0
        %v1781 = vadd.f32 %v1642, %v1780
        %v1782 = vand.u32 %v235, 4294901760
        %1783 = vmatmul.f32.gmra.mxu0 %v1782
        %v1784 = vpop.f32.mrf.mxu0
        %v1785 = vadd.f32 %v1648, %v1784
        %v1786 = vand.u32 %v236, 4294901760
        %1787 = vmatmul.f32.gmra.mxu0 %v1786
        %v1788 = vpop.f32.mrf.mxu0
        %v1789 = vadd.f32 %v1654, %v1788
        %v1790 = vand.u32 %v237, 4294901760
        %1791 = vmatmul.f32.gmra.mxu0 %v1790
        %v1792 = vpop.f32.mrf.mxu0
        %v1793 = vadd.f32 %v1660, %v1792
        %v1794 = vand.u32 %v238, 4294901760
        %1795 = vmatmul.f32.gmra.mxu0 %v1794
        %v1796 = vpop.f32.mrf.mxu0
        %v1797 = vadd.f32 %v1666, %v1796
        %v1798 = vand.u32 %v239, 4294901760
        %1799 = vmatmul.f32.gmra.mxu0 %v1798
        %v1800 = vpop.f32.mrf.mxu0
        %v1801 = vadd.f32 %v1672, %v1800
        %1802 = vdwg.mxu0
        %v1803 = vand.u32 %v1092, 4294901760
        %1804 = vmatpush.msra.mxu0 %v1803
        %v1805 = vand.u32 %v1088, 4294901760
        %1806 = vmatpush.msra.mxu0 %v1805
        %v1807 = vand.u32 %v1084, 4294901760
        %1808 = vmatpush.msra.mxu0 %v1807
        %v1809 = vand.u32 %v1080, 4294901760
        %1810 = vmatpush.msra.mxu0 %v1809
        %v1811 = vand.u32 %v1076, 4294901760
        %1812 = vmatpush.msra.mxu0 %v1811
        %v1813 = vand.u32 %v1072, 4294901760
        %1814 = vmatpush.msra.mxu0 %v1813
        %v1815 = vand.u32 %v1068, 4294901760
        %1816 = vmatpush.msra.mxu0 %v1815
        %v1817 = vand.u32 %v1064, 4294901760
        %1818 = vmatpush.msra.mxu0 %v1817
        %v1819 = vand.u32 %v1060, 4294901760
        %1820 = vmatpush.msra.mxu0 %v1819
        %v1821 = vand.u32 %v1056, 4294901760
        %1822 = vmatpush.msra.mxu0 %v1821
        %v1823 = vand.u32 %v1052, 4294901760
        %1824 = vmatpush.msra.mxu0 %v1823
        %v1825 = vand.u32 %v1048, 4294901760
        %1826 = vmatpush.msra.mxu0 %v1825
        %v1827 = vand.u32 %v1044, 4294901760
        %1828 = vmatpush.msra.mxu0 %v1827
        %v1829 = vand.u32 %v1040, 4294901760
        %1830 = vmatpush.msra.mxu0 %v1829
        %v1831 = vand.u32 %v1036, 4294901760
        %1832 = vmatpush.msra.mxu0 %v1831
        %v1833 = vand.u32 %v1032, 4294901760
        %1834 = vmatpush.msra.mxu0 %v1833
        %v1835 = vand.u32 %v224, 4294901760
        %1836 = vmatmul.f32.gmra.mxu0 %v1835
        %v1837 = vpop.f32.mrf.mxu0
        %v1838 = vadd.f32 %v1741, %v1837
        %v1839 = vand.u32 %v225, 4294901760
        %1840 = vmatmul.f32.gmra.mxu0 %v1839
        %v1841 = vpop.f32.mrf.mxu0
        %v1842 = vadd.f32 %v1745, %v1841
        %v1843 = vand.u32 %v226, 4294901760
        %1844 = vmatmul.f32.gmra.mxu0 %v1843
        %v1845 = vpop.f32.mrf.mxu0
        %v1846 = vadd.f32 %v1749, %v1845
        %v1847 = vand.u32 %v227, 4294901760
        %1848 = vmatmul.f32.gmra.mxu0 %v1847
        %v1849 = vpop.f32.mrf.mxu0
        %v1850 = vadd.f32 %v1753, %v1849
        %v1851 = vand.u32 %v228, 4294901760
        %1852 = vmatmul.f32.gmra.mxu0 %v1851
        %v1853 = vpop.f32.mrf.mxu0
        %v1854 = vadd.f32 %v1757, %v1853
        %v1855 = vand.u32 %v229, 4294901760
        %1856 = vmatmul.f32.gmra.mxu0 %v1855
        %v1857 = vpop.f32.mrf.mxu0
        %v1858 = vadd.f32 %v1761, %v1857
        %v1859 = vand.u32 %v230, 4294901760
        %1860 = vmatmul.f32.gmra.mxu0 %v1859
        %v1861 = vpop.f32.mrf.mxu0
        %v1862 = vadd.f32 %v1765, %v1861
        %v1863 = vand.u32 %v231, 4294901760
        %1864 = vmatmul.f32.gmra.mxu0 %v1863
        %v1865 = vpop.f32.mrf.mxu0
        %v1866 = vadd.f32 %v1769, %v1865
        %v1867 = vand.u32 %v232, 4294901760
        %1868 = vmatmul.f32.gmra.mxu0 %v1867
        %v1869 = vpop.f32.mrf.mxu0
        %v1870 = vadd.f32 %v1773, %v1869
        %v1871 = vand.u32 %v233, 4294901760
        %1872 = vmatmul.f32.gmra.mxu0 %v1871
        %v1873 = vpop.f32.mrf.mxu0
        %v1874 = vadd.f32 %v1777, %v1873
        %v1875 = vand.u32 %v234, 4294901760
        %1876 = vmatmul.f32.gmra.mxu0 %v1875
        %v1877 = vpop.f32.mrf.mxu0
        %v1878 = vadd.f32 %v1781, %v1877
        %v1879 = vand.u32 %v235, 4294901760
        %1880 = vmatmul.f32.gmra.mxu0 %v1879
        %v1881 = vpop.f32.mrf.mxu0
        %v1882 = vadd.f32 %v1785, %v1881
        %v1883 = vand.u32 %v236, 4294901760
        %1884 = vmatmul.f32.gmra.mxu0 %v1883
        %v1885 = vpop.f32.mrf.mxu0
        %v1886 = vadd.f32 %v1789, %v1885
        %v1887 = vand.u32 %v237, 4294901760
        %1888 = vmatmul.f32.gmra.mxu0 %v1887
        %v1889 = vpop.f32.mrf.mxu0
        %v1890 = vadd.f32 %v1793, %v1889
        %v1891 = vand.u32 %v238, 4294901760
        %1892 = vmatmul.f32.gmra.mxu0 %v1891
        %v1893 = vpop.f32.mrf.mxu0
        %v1894 = vadd.f32 %v1797, %v1893
        %v1895 = vand.u32 %v239, 4294901760
        %1896 = vmatmul.f32.gmra.mxu0 %v1895
        %v1897 = vpop.f32.mrf.mxu0
        %v1898 = vadd.f32 %v1801, %v1897
        %1899 = vdwg.mxu0
        %v1900 = vmax.f32 %v1838, %v1854
        %v1901 = vmax.f32 %v1842, %v1858
        %v1902 = vmax.f32 %v1846, %v1862
        %v1903 = vmax.f32 %v1850, %v1866
        %v1904 = vmax.f32 %v1900, %v1870
        %v1905 = vmax.f32 %v1901, %v1874
        %v1906 = vmax.f32 %v1902, %v1878
        %v1907 = vmax.f32 %v1903, %v1882
        %v1908 = vmax.f32 %v1904, %v1886
        %v1909 = vmax.f32 %v1905, %v1890
        %v1910 = vmax.f32 %v1906, %v1894
        %v1911 = vmax.f32 %v1907, %v1898
        %v1912 = vmax.f32 %v1908, %v1909
        %v1913 = vmax.f32 %v1910, %v1911
        %v1914 = vmax.f32 %v1912, %v1913
        %v1915 = vrot.slane %v1914, 4
        %v1916 = vmax.f32 %v1914, %v1915
        %v1917 = vrot.slane %v1916, 2
        %v1918 = vmax.f32 %v1916, %v1917
        %v1919 = vrot.slane %v1918, 1
        %v1920 = vmax.f32 %v1918, %v1919
        %1921 = vmax.xlane.f32.xlu0 %v1920
        %v1922 = vpop.xlane.xlu0 %1921
        %v1923 = vmin.f32 %v1838, %v1854
        %v1924 = vmin.f32 %v1842, %v1858
        %v1925 = vmin.f32 %v1846, %v1862
        %v1926 = vmin.f32 %v1850, %v1866
        %v1927 = vmin.f32 %v1923, %v1870
        %v1928 = vmin.f32 %v1924, %v1874
        %v1929 = vmin.f32 %v1925, %v1878
        %v1930 = vmin.f32 %v1926, %v1882
        %v1931 = vmin.f32 %v1927, %v1886
        %v1932 = vmin.f32 %v1928, %v1890
        %v1933 = vmin.f32 %v1929, %v1894
        %v1934 = vmin.f32 %v1930, %v1898
        %v1935 = vmin.f32 %v1931, %v1932
        %v1936 = vmin.f32 %v1933, %v1934
        %v1937 = vmin.f32 %v1935, %v1936
        %v1938 = vrot.slane %v1937, 4
        %v1939 = vmin.f32 %v1937, %v1938
        %v1940 = vrot.slane %v1939, 2
        %v1941 = vmin.f32 %v1939, %v1940
        %v1942 = vrot.slane %v1941, 1
        %v1943 = vmin.f32 %v1941, %v1942
        %1944 = vmin.xlane.f32.xlu0 %v1943
        %v1945 = vpop.xlane.xlu0 %1944
        %vm1946 = vcmp.gt.f32.partialorder %v1922, 0.1
        %v1947 = vsel %vm1946, 1, 0
        %v1948 = vcvt.s32.f32 %v1947
        %v1949 = vmul.f32 %v1838, %v1948
        %v1950 = vmul.f32 %v1842, %v1948
        %v1951 = vmul.f32 %v1846, %v1948
        %v1952 = vmul.f32 %v1850, %v1948
        %v1953 = vmul.f32 %v1854, %v1948
        %v1954 = vmul.f32 %v1858, %v1948
        %v1955 = vmul.f32 %v1862, %v1948
        %v1956 = vmul.f32 %v1866, %v1948
        %v1957 = vmul.f32 %v1870, %v1948
        %v1958 = vmul.f32 %v1874, %v1948
        %v1959 = vmul.f32 %v1878, %v1948
        %v1960 = vmul.f32 %v1882, %v1948
        %v1961 = vmul.f32 %v1886, %v1948
        %v1962 = vmul.f32 %v1890, %v1948
        %v1963 = vmul.f32 %v1894, %v1948
        %v1964 = vmul.f32 %v1898, %v1948
        %v1965 = vsub.f32 %v1922, %v1945
        %v1966 = vadd.f32 %v1965, 1e-09
        %v1967 = vrcp.pop %v1966
        %v1968 = vmul.f32 %v1966, %v1967
        %v1969 = vsub.f32 1.0, %v1968
        %v1970 = vmul.f32 %v1967, %v1969
        %v1971 = vadd.f32 %v1967, %v1970
        %vm1972 = vweird.f32 %v1966
        %vm1973 = vweird.f32 %v1967
        %vm1974 = vmor %vm1972, %vm1973
        %v1975 = vsel %vm1974, %v1967, %v1971
        %v1976 = vand.u32 2147483647, %v1966
        %vm1977 = vcmp.eq.f32.partialorder %v1976, 8.507059e+37
        %v1978 = vand.u32 %v1966, 2147483648
        %v1979 = vor.u32 1.1754944e-38, %v1978
        %v1980 = vsel %vm1977, %v1979, %v1975
        %v1981 = vmul.f32 1.0, %v1980
        %v1982 = vsub.f32 %v1949, %v1945
        %v1983 = vsub.f32 %v1950, %v1945
        %v1984 = vsub.f32 %v1951, %v1945
        %v1985 = vsub.f32 %v1952, %v1945
        %v1986 = vsub.f32 %v1953, %v1945
        %v1987 = vsub.f32 %v1954, %v1945
        %v1988 = vsub.f32 %v1955, %v1945
        %v1989 = vsub.f32 %v1956, %v1945
        %v1990 = vsub.f32 %v1957, %v1945
        %v1991 = vsub.f32 %v1958, %v1945
        %v1992 = vsub.f32 %v1959, %v1945
        %v1993 = vsub.f32 %v1960, %v1945
        %v1994 = vsub.f32 %v1961, %v1945
        %v1995 = vsub.f32 %v1962, %v1945
        %v1996 = vsub.f32 %v1963, %v1945
        %v1997 = vsub.f32 %v1964, %v1945
        %v1998 = vmul.f32 %v1982, %v1981
        %v1999 = vmul.f32 %v1983, %v1981
        %v2000 = vmul.f32 %v1984, %v1981
        %v2001 = vmul.f32 %v1985, %v1981
        %v2002 = vmul.f32 %v1986, %v1981
        %v2003 = vmul.f32 %v1987, %v1981
        %v2004 = vmul.f32 %v1988, %v1981
        %v2005 = vmul.f32 %v1989, %v1981
        %v2006 = vmul.f32 %v1990, %v1981
        %v2007 = vmul.f32 %v1991, %v1981
        %v2008 = vmul.f32 %v1992, %v1981
        %v2009 = vmul.f32 %v1993, %v1981
        %v2010 = vmul.f32 %v1994, %v1981
        %v2011 = vmul.f32 %v1995, %v1981
        %v2012 = vmul.f32 %v1996, %v1981
        %v2013 = vmul.f32 %v1997, %v1981
        %2014 = vst [vmem:[%s223] sm:$0xff] %v1998
        %2015 = vst [vmem:[%s223 + $0x8] sm:$0xff] %v1999
        %2016 = vst [vmem:[%s223 + $0x10] sm:$0xff] %v2000
        %2017 = vst [vmem:[%s223 + $0x18] sm:$0xff] %v2001
        %2018 = vst [vmem:[%s223 + $0x20] sm:$0xff] %v2002
        %2019 = vst [vmem:[%s223 + $0x28] sm:$0xff] %v2003
        %2020 = vst [vmem:[%s223 + $0x30] sm:$0xff] %v2004
        %2021 = vst [vmem:[%s223 + $0x38] sm:$0xff] %v2005
        %2022 = vst [vmem:[%s223 + $0x40] sm:$0xff] %v2006
        %2023 = vst [vmem:[%s223 + $0x48] sm:$0xff] %v2007
        %2024 = vst [vmem:[%s223 + $0x50] sm:$0xff] %v2008
        %2025 = vst [vmem:[%s223 + $0x58] sm:$0xff] %v2009
        %2026 = vst [vmem:[%s223 + $0x60] sm:$0xff] %v2010
        %2027 = vst [vmem:[%s223 + $0x68] sm:$0xff] %v2011
        %2028 = vst [vmem:[%s223 + $0x70] sm:$0xff] %v2012
        %2029 = vst [vmem:[%s223 + $0x78] sm:$0xff] %v2013
        %s2030 = sand.u32 %s97, 1
        %s2031 = scalar_lea.sflag [#allocation4], %s2030
        %s2032 = sand.u32 %s97, 1
        %s2033 = smul.addr %s2032, 128
        %s2034 = scalar_lea.vmem [#allocation8], %s2033
        // Predicated region
        $region45: #{tpu_custom_call.1} parent=31 // pred_check
          %p2035 = pneg %p107
        $region46: #{tpu_custom_call.1} parent=31 // pred_check_branch
          %2037 = sbr.rel (%p2035) target = $region48
        $region47: #{tpu_custom_call.1} parent=31 // pred_region
          %2039 = vsyncadd %s2031, 0
          %s2040 = smul.addr %s21, 16
          %s2041 = smul.addr %s2040, 8
          %s2042 = scalar_lea.hbm %s3, %s2041
          %s2043 = sshll.u32 %s2034, 4
          %s2044 = int_to_ptr.vmem [resolvable:$true] %s2043
          %s2045 = sshll.u32 %s2042, 4
          %s2046 = int_to_ptr.hbm [resolvable:$true] %s2045
          %2051 = dma.vmem_to_hbm [thread:$0]  %s2044, 2048, %s2046, %s2031, 128, 128, 8
        $region48: #{tpu_custom_call.1} parent=31 // pred_fallthru
          _
      $region32: #{tpu_custom_call.1} parent=5 // pred_fallthru
        _
      %p2052 = scmp.le.s32.totalorder 2, %s16
      // Predicated region
      $region49: #{tpu_custom_call.1} parent=5 // pred_check
        %p2053 = pneg %p2052
      $region50: #{tpu_custom_call.1} parent=5 // pred_check_branch
        %2055 = sbr.rel (%p2053) target = $region52
      $region51: #{tpu_custom_call.1} parent=5 // pred_region
        %s2056 = ssub.s32 %s16, 2
        // Predicated region
        $region53: #{tpu_custom_call.1} parent=51 // pred_check
          %p2057 = pneg %p113
        $region54: #{tpu_custom_call.1} parent=51 // pred_check_branch
          %2059 = sbr.rel (%p2057) target = $region56
        $region55: #{tpu_custom_call.1} parent=51 // pred_region
          %s2060 = sand.u32 %s98, 1
          %s2061 = scalar_lea.sflag [#allocation4], %s2060
          %s2062 = sand.u32 %s98, 1
          %s2063 = smul.addr %s2062, 128
          %s2064 = scalar_lea.vmem [#allocation8], %s2063
          %2066 = dma.done %s2061, 2048
        $region56: #{tpu_custom_call.1} parent=51 // pred_fallthru
          _
      $region52: #{tpu_custom_call.1} parent=5 // pred_fallthru
        _
    $region6: #{tpu_custom_call.1} parent=1 // loop_footer
      %s20 = sadd.s32 1, %s16
    $region7: #{tpu_custom_call.1} parent=1 // loop_footer_branch
      %15 = sbr.rel target = $region3
    $region8: #{tpu_custom_call.1} parent=1 // loop_exit
      _
    %2067 = vsyncpa [#allocation3], 1
    %s2068 = scalar_lea.sflag [#allocation3], 1
    %2069 = vsyncpa %s2068, 1
    %2070 = vsyncpa [#allocation6], 1
    %2071 = vsyncpa [#allocation4], 1
    %s2072 = scalar_lea.sflag [#allocation4], 1
    %2073 = vsyncpa %s2072, 1

</llo_original>
